<compile_context>
chip_gen: v6e
topology: v6e:2x2x1
jax: 0.10.0
libtpu: 0.0.40
codegen_flags: <defaults>
</compile_context>

<pallas_src>
import functools

import jax
import jax.numpy as jnp
from jax.experimental import pallas as pl
from jax.experimental.pallas import tpu as pltpu

LANE = 128


def _round_up(v, m):
    return ((v + m - 1) // m) * m


# ----------------------------- Pallas kernel -------------------------------

def _fused_sage_kernel(x_hbm, a_ref, wl_ref, wr_ref, b_ref, o_ref,
                       h_ref, acc_ref, invdeg_ref,
                       *, num_layers, tm, tk, deg_col, a_resident):
    """Fused multi-layer SAGEConv.

    Grid = (layer, m_tile, k_tile).  Each step accumulates
    A[m_tile, k_tile] @ h[k_tile, :] into a f32 VMEM accumulator; at the last
    k tile the two linear projections + bias (+ ReLU) run and the new
    activations are written into the ping-pong half of the VMEM scratch `h`.
    Only the last layer's result hits HBM.
    """
    layer = pl.program_id(0)
    m = pl.program_id(1)
    k = pl.program_id(2)
    nk = pl.num_programs(2)

    row0 = pl.multiple_of(m * tm, tm)
    col0 = pl.multiple_of(k * tk, tk)

    # One-time init: single DMA of the padded bf16 input features into the
    # layer-0 read slot of the activation scratch (x is never re-fetched).
    @pl.when((layer == 0) & (m == 0) & (k == 0))
    def _():
        pltpu.sync_copy(x_hbm, h_ref.at[0])

    # Zero the aggregation accumulator at the start of every K sweep.
    @pl.when(k == 0)
    def _():
        acc_ref[...] = jnp.zeros_like(acc_ref)

    # Activation ping-pong: read slot = layer % 2, write slot = the other one.
    read_slot = layer % 2
    h_in = h_ref.at[read_slot]

    # Adjacency tile: int8 in memory, cast to bf16 for the MXU.  When the
    # whole matrix is VMEM-resident we slice the (N, N) block; otherwise the
    # BlockSpec already delivered the (tm, tk) slab.
    if a_resident:
        a_tile = a_ref[pl.ds(row0, tm), pl.ds(col0, tk)]
    else:
        a_tile = a_ref[...]
    a_tile = a_tile.astype(jnp.bfloat16)

    h_k = h_in[pl.ds(col0, tk), :]                         # (tk, cpad) bf16
    acc_ref[...] += jnp.dot(a_tile, h_k, preferred_element_type=jnp.float32)

    # Epilogue: finish this row tile of the layer after the full K sweep.
    @pl.when(k == nk - 1)
    def _():
        # Row degrees fell out of the matmul (all-ones spare lane of x), so
        # they are exact; compute 1/deg once at layer 0 and reuse.
        @pl.when(layer == 0)
        def _():
            deg = jnp.maximum(acc_ref[:, deg_col:deg_col + 1], 1.0)
            invdeg_ref[pl.ds(row0, tm), :] = pl.reciprocal(deg, approx=False)

        inv = invdeg_ref[pl.ds(row0, tm), :]               # (tm, 1) f32
        agg = (acc_ref[...] * inv).astype(jnp.bfloat16)    # (tm, cpad) mean-agg
        h_m = h_in[pl.ds(row0, tm), :]                     # (tm, cpad) bf16
        # Two MXU dots (no lane concatenate / (tm, 2*cpad) temporary).
        out = (jnp.dot(agg, wl_ref[0], preferred_element_type=jnp.float32)
               + jnp.dot(h_m, wr_ref[0], preferred_element_type=jnp.float32)
               + b_ref[0])                                 # (tm, cpad) f32

        # ReLU'd activations for the next layer (the value stored after the
        # last layer is never read, so storing ReLU unconditionally is safe).
        h_out = h_ref.at[1 - read_slot]
        h_out[pl.ds(row0, tm), :] = jnp.maximum(out, 0.0).astype(jnp.bfloat16)

        @pl.when(layer == num_layers - 1)
        def _():
            o_ref[...] = out.astype(o_ref.dtype)           # final layer: no ReLU


# ------------------------------ SAGE module --------------------------------

def init_sage_params(key, in_channels, hidden_channels, out_channels, num_layers):
    """Deterministic parameter init (Glorot-ish), shapes match PyG SAGEConv."""
    dims = [in_channels] + [hidden_channels] * (num_layers - 1) + [out_channels]
    params = []
    for i in range(num_layers):
        cin, cout = dims[i], dims[i + 1]
        key, k1, k2, k3 = jax.random.split(key, 4)
        scale = 1.0 / jnp.sqrt(jnp.float32(cin))
        w_l = jax.random.uniform(k1, (cin, cout), jnp.float32, -scale, scale)
        w_r = jax.random.uniform(k2, (cin, cout), jnp.float32, -scale, scale)
        b_l = jax.random.uniform(k3, (1, cout), jnp.float32, -scale, scale)
        params.append((w_l, w_r, b_l))
    return params


def sage_forward(params, x, adj_dense, dropout_p=0.5):
    """SAGE.forward: conv -> relu -> dropout for all but last; last conv plain.

    Inference mode: F.dropout(training=False) is identity.
    """
    # TODO(synk): training-mode dropout (pltpu.prng_random_bits mask) not wired
    # in; forward matches module.eval() semantics.
    del dropout_p

    n, c_in = x.shape
    num_layers = len(params)
    c_out = params[-1][0].shape[1]

    # Pad every channel dim up to the 128-lane width so all tiles are
    # lane-dense; zero-padding is exact (zero rows/cols in W, bias 0, ReLU(0)=0).
    dims = [c_in] + [w_l.shape[1] for (w_l, _, _) in params]
    cpad = _round_up(max(dims + [LANE]), LANE)
    if c_in >= cpad:
        # Need one spare zero-padded lane to carry the all-ones degree column.
        cpad += LANE
    deg_col = c_in

    # Row / K tiling: pad N (no assert) so arbitrary node counts work; tiles
    # are 512 for large graphs (deep K keeps MXU cadence healthy at cpad=128).
    if n <= 512:
        tm = tk = _round_up(n, LANE)
    else:
        tm = tk = 512
    npad = _round_up(n, tm)
    nm, nk = npad // tm, npad // tk

    # Per-generation VMEM budget (v5e/v6e: 128 MiB physical, v7x: 64 MiB) and
    # adjacency residency decision.
    try:
        vmem_cap = int(pltpu.get_tpu_info().vmem_capacity_bytes)
    except Exception:
        vmem_cap = 64 * 1024 * 1024
    budget = max(vmem_cap - (24 << 20), vmem_cap // 2)

    bytes_fixed = (2 * npad * cpad * 2            # h ping-pong (bf16)
                   + tm * cpad * 4                # acc (f32)
                   + 2 * tm * cpad * 4            # out block, double-buffered
                   + 2 * (2 * cpad * cpad * 2 + cpad * 4)   # W_l, W_r, bias
                   + npad * LANE * 4)             # invdeg (lane-padded)
    # int8 adjacency; conservatively assume the pipeline double-buffers it.
    a_resident = (bytes_fixed + 2 * npad * npad) <= budget

    # Zero-padded, stacked per-layer weights (bf16 for the MXU) and biases.
    wl_list, wr_list, b_list = [], [], []
    for (w_l, w_r, b_l) in params:
        cin, cout = w_l.shape
        wl_list.append(jnp.zeros((cpad, cpad), jnp.bfloat16)
                       .at[:cin, :cout].set(w_l.astype(jnp.bfloat16)))
        wr_list.append(jnp.zeros((cpad, cpad), jnp.bfloat16)
                       .at[:cin, :cout].set(w_r.astype(jnp.bfloat16)))
        b_list.append(jnp.zeros((1, cpad), jnp.float32)
                      .at[:, :cout].set(b_l.astype(jnp.float32)))
    wl_all = jnp.stack(wl_list)                   # (L, cpad, cpad) bf16
    wr_all = jnp.stack(wr_list)                   # (L, cpad, cpad) bf16
    b_all = jnp.stack(b_list)                     # (L, 1, cpad)    f32

    # Padded bf16 features with an all-ones spare lane: A @ x then yields the
    # row degrees in that lane at zero marginal MXU cost (weight rows for
    # padded lanes are zero, so the projection is unaffected).
    x_pad = jnp.zeros((npad, cpad), jnp.bfloat16).at[:n, :c_in].set(
        x.astype(jnp.bfloat16))
    x_pad = x_pad.at[:, deg_col].set(1.0)

    # 0/1 adjacency as int8 in HBM (exact; halves the N^2 stream vs bf16).
    a_i8 = jnp.zeros((npad, npad), jnp.int8).at[:n, :n].set(
        adj_dense.astype(jnp.int8))

    if a_resident:
        # Whole adjacency lives in VMEM: constant index map -> one DMA total.
        a_spec = pl.BlockSpec((npad, npad), lambda l, m, k: (0, 0))
    else:
        # Stream (tm, tk) int8 slabs (re-read once per layer).
        a_spec = pl.BlockSpec((tm, tk), lambda l, m, k: (m, k))

    kernel = functools.partial(
        _fused_sage_kernel, num_layers=num_layers, tm=tm, tk=tk,
        deg_col=deg_col, a_resident=a_resident)

    out_pad = pl.pallas_call(
        kernel,
        out_shape=jax.ShapeDtypeStruct((npad, cpad), jnp.float32),
        grid=(num_layers, nm, nk),
        in_specs=[
            pl.BlockSpec(memory_space=pl.ANY),                           # x (HBM)
            a_spec,                                                      # A (int8)
            pl.BlockSpec((1, cpad, cpad), lambda l, m, k: (l, 0, 0)),    # W_l
            pl.BlockSpec((1, cpad, cpad), lambda l, m, k: (l, 0, 0)),    # W_r
            pl.BlockSpec((1, 1, cpad), lambda l, m, k: (l, 0, 0)),       # bias
        ],
        out_specs=pl.BlockSpec((tm, cpad), lambda l, m, k: (m, 0)),
        scratch_shapes=[
            pltpu.VMEM((2, npad, cpad), jnp.bfloat16),   # h ping-pong activations
            pltpu.VMEM((tm, cpad), jnp.float32),         # f32 A@h accumulator
            pltpu.VMEM((npad, 1), jnp.float32),          # 1/deg
        ],
        compiler_params=pltpu.CompilerParams(
            # Layer / row / K axes all carry scratch state, so all sequential.
            # TODO(synk): v7x dual-TensorCore split needs HBM-carried h + a
            # per-layer barrier (or per-layer un-fusion) to mark rows parallel.
            dimension_semantics=("arbitrary", "arbitrary", "arbitrary"),
            vmem_limit_bytes=int(budget),
        ),
    )(x_pad, a_i8, wl_all, wr_all, b_all)

    return out_pad[:n, :c_out]


# Plain-JAX f32 reference (for a loose correctness check).
def sage_forward_reference(params, x, adj_dense):
    deg = jnp.maximum(adj_dense.sum(axis=1, keepdims=True), 1.0)
    a_norm = adj_dense / deg
    h = x
    for li, (w_l, w_r, b_l) in enumerate(params):
        h_new = (a_norm @ h) @ w_l + h @ w_r + b_l
        h = jnp.maximum(h_new, 0.0) if li < len(params) - 1 else h_new
    return h


# --------------------------------- main -------------------------------------

if __name__ == "__main__":
    key = jax.random.PRNGKey(0)

    # Small synthetic graph.
    N = 64            # nodes
    IN_C = 16         # in_channels
    HID_C = 32        # hidden_channels
    OUT_C = 8         # out_channels
    NUM_LAYERS = 3
    DROPOUT = 0.5

    key, kx, ka, kp = jax.random.split(key, 4)
    x = jax.random.normal(kx, (N, IN_C), jnp.float32)
    adj_rand = jax.random.bernoulli(ka, 0.1, (N, N)).astype(jnp.float32)
    adj_dense = jnp.maximum(adj_rand, adj_rand.T)   # symmetric, like adj_t

    params = init_sage_params(kp, IN_C, HID_C, OUT_C, NUM_LAYERS)

    out = sage_forward(params, x, adj_dense, DROPOUT)
    out = jax.block_until_ready(out)

    assert out.shape == (N, OUT_C), out.shape
    assert jnp.isfinite(out).all()

    # Loose check vs. plain-JAX f32 reference (kernel carries activations and
    # feeds the MXU in bf16, so tolerances are generous).
    ref = sage_forward_reference(params, x, adj_dense)
    assert jnp.allclose(out, ref, rtol=1e-1, atol=1e-1), float(
        jnp.max(jnp.abs(out - ref)))

    print("KERNEL_OK")
</pallas_src>

<mosaic_0001>
module attributes {stable_mosaic.version = 11 : i64} {
  func.func @_fused_sage_kernel(%arg0: i32, %arg1: i32, %arg2: i32, %arg3: memref<128x128xbf16, #tpu.memory_space<any>>, %arg4: memref<128x128xi8, #tpu.memory_space<vmem>>, %arg5: memref<1x128x128xbf16, #tpu.memory_space<vmem>>, %arg6: memref<1x128x128xbf16, #tpu.memory_space<vmem>>, %arg7: memref<1x1x128xf32, #tpu.memory_space<vmem>>, %arg8: memref<128x128xf32, #tpu.memory_space<vmem>>, %arg9: memref<2x128x128xbf16, #tpu.memory_space<vmem>>, %arg10: memref<128x128xf32, #tpu.memory_space<vmem>>, %arg11: memref<128x1xf32, #tpu.memory_space<vmem>>) attributes {dimension_semantics = [#tpu.dimension_semantics<arbitrary>, #tpu.dimension_semantics<arbitrary>, #tpu.dimension_semantics<arbitrary>], iteration_bounds = array<i64: 3, 1, 1>, scalar_prefetch = 0 : i64, scratch_operands = 3 : i64, tpu.core_type = #tpu.core_type<tc>, window_params = [{}, {pipeline_mode = #tpu.pipeline_mode<synchronous>, transform_indices = @transform_1, window_bounds = array<i64: 128, 128>}, {transform_indices = @transform_2, window_bounds = array<i64: 1, 128, 128>}, {transform_indices = @transform_3, window_bounds = array<i64: 1, 128, 128>}, {transform_indices = @transform_4, window_bounds = array<i64: 1, 1, 128>}, {transform_indices = @transform_5, window_bounds = array<i64: 128, 128>}]} {
    %c128_i32 = arith.constant 128 : i32
    %0 = arith.muli %arg1, %c128_i32 : i32
    %1 = tpu.assume_multiple %0, 128 : i32
    %c128_i32_0 = arith.constant 128 : i32
    %2 = arith.muli %arg2, %c128_i32_0 : i32
    %3 = tpu.assume_multiple %2, 128 : i32
    %c0_i32 = arith.constant 0 : i32
    %4 = arith.cmpi eq, %arg0, %c0_i32 : i32
    %c0_i32_1 = arith.constant 0 : i32
    %5 = arith.cmpi eq, %arg1, %c0_i32_1 : i32
    %6 = arith.andi %4, %5 : i1
    %c0_i32_2 = arith.constant 0 : i32
    %7 = arith.cmpi eq, %arg2, %c0_i32_2 : i32
    %8 = arith.andi %6, %7 : i1
    %9 = arith.extui %8 : i1 to i32
    %c0_i32_3 = arith.constant 0 : i32
    %10 = arith.cmpi ne, %9, %c0_i32_3 : i32
    scf.if %10 {
      %c0_i32_18 = arith.constant 0 : i32
      "tpu.region"() ({
        %39 = tpu.sem_alloc : memref<!tpu.dma_semaphore, #tpu.memory_space<semaphore_mem>>
        %c0_i32_19 = arith.constant 0 : i32
        %c0_i32_20 = arith.constant 0 : i32
        %40 = tpu.memref_slice %arg9[%c0_i32_18, %c0_i32_19, %c0_i32_20] : memref<2x128x128xbf16, #tpu.memory_space<vmem>> -> memref<1x128x128xbf16, #tpu.memory_space<vmem>>
        %41 = tpu.memref_squeeze %40 : memref<1x128x128xbf16, #tpu.memory_space<vmem>> -> memref<128x128xbf16, #tpu.memory_space<vmem>>
        tpu.enqueue_dma source(%arg3 : memref<128x128xbf16, #tpu.memory_space<any>>) target(%41 : memref<128x128xbf16, #tpu.memory_space<vmem>>) target_semaphore(%39 : memref<!tpu.dma_semaphore, #tpu.memory_space<semaphore_mem>>)
        %c0_i32_21 = arith.constant 0 : i32
        %c0_i32_22 = arith.constant 0 : i32
        %42 = tpu.memref_slice %arg9[%c0_i32_18, %c0_i32_21, %c0_i32_22] : memref<2x128x128xbf16, #tpu.memory_space<vmem>> -> memref<1x128x128xbf16, #tpu.memory_space<vmem>>
        %43 = tpu.memref_squeeze %42 : memref<1x128x128xbf16, #tpu.memory_space<vmem>> -> memref<128x128xbf16, #tpu.memory_space<vmem>>
        tpu.wait_dma2 semaphore(%39 : memref<!tpu.dma_semaphore, #tpu.memory_space<semaphore_mem>>) src(%arg3 : memref<128x128xbf16, #tpu.memory_space<any>>) dst(%43 : memref<128x128xbf16, #tpu.memory_space<vmem>>)
        tpu.yield
      }) : () -> ()
    } else {
    }
    %c0_i32_4 = arith.constant 0 : i32
    %11 = arith.cmpi eq, %arg2, %c0_i32_4 : i32
    %12 = arith.extui %11 : i1 to i32
    %c0_i32_5 = arith.constant 0 : i32
    %13 = arith.cmpi ne, %12, %c0_i32_5 : i32
    scf.if %13 {
      %cst_18 = arith.constant 0.000000e+00 : f32
      %39 = vector.broadcast %cst_18 : f32 to vector<128x128xf32>
      %c0_19 = arith.constant 0 : index
      %c0_20 = arith.constant 0 : index
      %40 = vector.load %arg10[%c0_19, %c0_20] : memref<128x128xf32, #tpu.memory_space<vmem>>, vector<128x128xf32>
      tpu.vector_store %arg10[%c0_19, %c0_20], %39 {strides = array<i32>} : memref<128x128xf32, #tpu.memory_space<vmem>>, vector<128x128xf32>,
    } else {
    }
    %c2_i32 = arith.constant 2 : i32
    %c0_i32_6 = arith.constant 0 : i32
    %14 = arith.cmpi eq, %c2_i32, %c0_i32_6 : i32
    %c1_i32 = arith.constant 1 : i32
    %15 = arith.select %14, %c1_i32, %c2_i32 : i32
    %16 = arith.remsi %arg0, %15 : i32
    %c0_i32_7 = arith.constant 0 : i32
    %17 = arith.cmpi ne, %16, %c0_i32_7 : i32
    %c0_i32_8 = arith.constant 0 : i32
    %18 = arith.cmpi slt, %16, %c0_i32_8 : i32
    %c0_i32_9 = arith.constant 0 : i32
    %19 = arith.cmpi slt, %15, %c0_i32_9 : i32
    %20 = arith.xori %18, %19 : i1
    %21 = arith.andi %20, %17 : i1
    %22 = arith.addi %16, %15 : i32
    %23 = arith.select %21, %22, %16 : i32
    %24 = arith.index_cast %1 : i32 to index
    %25 = arith.index_cast %3 : i32 to index
    %26 = vector.load %arg4[%24, %25] : memref<128x128xi8, #tpu.memory_space<vmem>>, vector<128x128xi8>
    %27 = arith.sitofp %26 : vector<128x128xi8> to vector<128x128xbf16>
    %c0_i32_10 = arith.constant 0 : i32
    %c0_i32_11 = arith.constant 0 : i32
    %28 = tpu.memref_slice %arg9[%23, %c0_i32_10, %c0_i32_11] : memref<2x128x128xbf16, #tpu.memory_space<vmem>> -> memref<1x128x128xbf16, #tpu.memory_space<vmem>>
    %29 = tpu.memref_squeeze %28 : memref<1x128x128xbf16, #tpu.memory_space<vmem>> -> memref<128x128xbf16, #tpu.memory_space<vmem>>
    %30 = arith.index_cast %3 : i32 to index
    %c0 = arith.constant 0 : index
    %31 = vector.load %29[%30, %c0] : memref<128x128xbf16, #tpu.memory_space<vmem>>, vector<128x128xbf16>
    %c0_12 = arith.constant 0 : index
    %c0_13 = arith.constant 0 : index
    %32 = vector.load %arg10[%c0_12, %c0_13] : memref<128x128xf32, #tpu.memory_space<vmem>>, vector<128x128xf32>
    %cst = arith.constant dense<0.000000e+00> : vector<128x128xf32>
    %33 = tpu.matmul %27, %31, %cst {dimension_numbers = #tpu.dot_dimension_numbers<[1], [0], [0], [1], [0, 0, 1, 1], [], []>} : vector<128x128xbf16>, vector<128x128xbf16>, vector<128x128xf32> -> vector<128x128xf32>
    %34 = arith.addf %32, %33 : vector<128x128xf32>
    %c0_14 = arith.constant 0 : index
    %c0_15 = arith.constant 0 : index
    %35 = vector.load %arg10[%c0_14, %c0_15] : memref<128x128xf32, #tpu.memory_space<vmem>>, vector<128x128xf32>
    tpu.vector_store %arg10[%c0_14, %c0_15], %34 {strides = array<i32>} : memref<128x128xf32, #tpu.memory_space<vmem>>, vector<128x128xf32>,
    %c0_i32_16 = arith.constant 0 : i32
    %36 = arith.cmpi eq, %arg2, %c0_i32_16 : i32
    %37 = arith.extui %36 : i1 to i32
    %c0_i32_17 = arith.constant 0 : i32
    %38 = arith.cmpi ne, %37, %c0_i32_17 : i32
    scf.if %38 {
      %c0_i32_18 = arith.constant 0 : i32
      %39 = arith.cmpi eq, %arg0, %c0_i32_18 : i32
      %40 = arith.extui %39 : i1 to i32
      %c0_i32_19 = arith.constant 0 : i32
      %41 = arith.cmpi ne, %40, %c0_i32_19 : i32
      scf.if %41 {
        %c0_44 = arith.constant 0 : index
        %c16 = arith.constant 16 : index
        %74 = vector.load %arg10[%c0_44, %c16] : memref<128x128xf32, #tpu.memory_space<vmem>>, vector<128x1xf32>
        %cst_45 = arith.constant 1.000000e+00 : f32
        %75 = vector.broadcast %cst_45 : f32 to vector<128x1xf32>
        %76 = arith.maximumf %74, %75 : vector<128x1xf32>
        %77 = tpu.reciprocal %76 : vector<128x1xf32> -> vector<128x1xf32>
        %78 = arith.index_cast %1 : i32 to index
        %c0_46 = arith.constant 0 : index
        %79 = vector.load %arg11[%78, %c0_46] : memref<128x1xf32, #tpu.memory_space<vmem>>, vector<128x1xf32>
        tpu.vector_store %arg11[%78, %c0_46], %77 {strides = array<i32>} : memref<128x1xf32, #tpu.memory_space<vmem>>, vector<128x1xf32>,
      } else {
      }
      %42 = arith.index_cast %1 : i32 to index
      %c0_20 = arith.constant 0 : index
      %43 = vector.load %arg11[%42, %c0_20] : memref<128x1xf32, #tpu.memory_space<vmem>>, vector<128x1xf32>
      %c0_21 = arith.constant 0 : index
      %c0_22 = arith.constant 0 : index
      %44 = vector.load %arg10[%c0_21, %c0_22] : memref<128x128xf32, #tpu.memory_space<vmem>>, vector<128x128xf32>
      %45 = vector.broadcast %43 : vector<128x1xf32> to vector<128x128xf32>
      %46 = arith.mulf %44, %45 : vector<128x128xf32>
      %47 = arith.truncf %46 : vector<128x128xf32> to vector<128x128xbf16>
      %c0_i32_23 = arith.constant 0 : i32
      %c0_i32_24 = arith.constant 0 : i32
      %48 = tpu.memref_slice %arg9[%23, %c0_i32_23, %c0_i32_24] : memref<2x128x128xbf16, #tpu.memory_space<vmem>> -> memref<1x128x128xbf16, #tpu.memory_space<vmem>>
      %49 = tpu.memref_squeeze %48 : memref<1x128x128xbf16, #tpu.memory_space<vmem>> -> memref<128x128xbf16, #tpu.memory_space<vmem>>
      %50 = arith.index_cast %1 : i32 to index
      %c0_25 = arith.constant 0 : index
      %51 = vector.load %49[%50, %c0_25] : memref<128x128xbf16, #tpu.memory_space<vmem>>, vector<128x128xbf16>
      %c0_26 = arith.constant 0 : index
      %c0_27 = arith.constant 0 : index
      %c0_28 = arith.constant 0 : index
      %52 = vector.load %arg5[%c0_26, %c0_27, %c0_28] : memref<1x128x128xbf16, #tpu.memory_space<vmem>>, vector<1x128x128xbf16>
      %53 = vector.shape_cast %52 : vector<1x128x128xbf16> to vector<128x128xbf16>
      %cst_29 = arith.constant dense<0.000000e+00> : vector<128x128xf32>
      %54 = tpu.matmul %47, %53, %cst_29 {dimension_numbers = #tpu.dot_dimension_numbers<[1], [0], [0], [1], [0, 0, 1, 1], [], []>} : vector<128x128xbf16>, vector<128x128xbf16>, vector<128x128xf32> -> vector<128x128xf32>
      %c0_30 = arith.constant 0 : index
      %c0_31 = arith.constant 0 : index
      %c0_32 = arith.constant 0 : index
      %55 = vector.load %arg6[%c0_30, %c0_31, %c0_32] : memref<1x128x128xbf16, #tpu.memory_space<vmem>>, vector<1x128x128xbf16>
      %56 = vector.shape_cast %55 : vector<1x128x128xbf16> to vector<128x128xbf16>
      %cst_33 = arith.constant dense<0.000000e+00> : vector<128x128xf32>
      %57 = tpu.matmul %51, %56, %cst_33 {dimension_numbers = #tpu.dot_dimension_numbers<[1], [0], [0], [1], [0, 0, 1, 1], [], []>} : vector<128x128xbf16>, vector<128x128xbf16>, vector<128x128xf32> -> vector<128x128xf32>
      %58 = arith.addf %54, %57 : vector<128x128xf32>
      %c0_34 = arith.constant 0 : index
      %c0_35 = arith.constant 0 : index
      %c0_36 = arith.constant 0 : index
      %59 = vector.load %arg7[%c0_34, %c0_35, %c0_36] : memref<1x1x128xf32, #tpu.memory_space<vmem>>, vector<1x1x128xf32>
      %60 = vector.shape_cast %59 : vector<1x1x128xf32> to vector<1x128xf32>
      %61 = vector.broadcast %60 : vector<1x128xf32> to vector<128x128xf32>
      %62 = arith.addf %58, %61 : vector<128x128xf32>
      %c1_i32_37 = arith.constant 1 : i32
      %63 = arith.subi %c1_i32_37, %23 : i32
      %cst_38 = arith.constant 0.000000e+00 : f32
      %64 = vector.broadcast %cst_38 : f32 to vector<128x128xf32>
      %65 = arith.maximumf %62, %64 : vector<128x128xf32>
      %66 = arith.truncf %65 : vector<128x128xf32> to vector<128x128xbf16>
      %c0_i32_39 = arith.constant 0 : i32
      %c0_i32_40 = arith.constant 0 : i32
      %67 = tpu.memref_slice %arg9[%63, %c0_i32_39, %c0_i32_40] : memref<2x128x128xbf16, #tpu.memory_space<vmem>> -> memref<1x128x128xbf16, #tpu.memory_space<vmem>>
      %68 = tpu.memref_squeeze %67 : memref<1x128x128xbf16, #tpu.memory_space<vmem>> -> memref<128x128xbf16, #tpu.memory_space<vmem>>
      %69 = arith.index_cast %1 : i32 to index
      %c0_41 = arith.constant 0 : index
      %70 = vector.load %68[%69, %c0_41] : memref<128x128xbf16, #tpu.memory_space<vmem>>, vector<128x128xbf16>
      tpu.vector_store %68[%69, %c0_41], %66 {strides = array<i32>} : memref<128x128xbf16, #tpu.memory_space<vmem>>, vector<128x128xbf16>,
      %c2_i32_42 = arith.constant 2 : i32
      %71 = arith.cmpi eq, %arg0, %c2_i32_42 : i32
      %72 = arith.extui %71 : i1 to i32
      %c0_i32_43 = arith.constant 0 : i32
      %73 = arith.cmpi ne, %72, %c0_i32_43 : i32
      scf.if %73 {
        %c0_44 = arith.constant 0 : index
        %c0_45 = arith.constant 0 : index
        %74 = vector.load %arg8[%c0_44, %c0_45] : memref<128x128xf32, #tpu.memory_space<vmem>>, vector<128x128xf32>
        tpu.vector_store %arg8[%c0_44, %c0_45], %62 {strides = array<i32>} : memref<128x128xf32, #tpu.memory_space<vmem>>, vector<128x128xf32>,
      } else {
      }
    } else {
    }
    return
  }
  func.func @transform_1(%arg0: i32, %arg1: i32, %arg2: i32) -> (i32, i32) {
    %c0_i32 = arith.constant 0 : i32
    %c0_i32_0 = arith.constant 0 : i32
    %c0_i32_1 = arith.constant 0 : i32
    return %c0_i32, %c0_i32_0 : i32, i32
  }
  func.func @transform_2(%arg0: i32, %arg1: i32, %arg2: i32) -> (i32, i32, i32) {
    %c0_i32 = arith.constant 0 : i32
    %c0_i32_0 = arith.constant 0 : i32
    %c0_i32_1 = arith.constant 0 : i32
    return %arg0, %c0_i32, %c0_i32_0 : i32, i32, i32
  }
  func.func @transform_3(%arg0: i32, %arg1: i32, %arg2: i32) -> (i32, i32, i32) {
    %c0_i32 = arith.constant 0 : i32
    %c0_i32_0 = arith.constant 0 : i32
    %c0_i32_1 = arith.constant 0 : i32
    return %arg0, %c0_i32, %c0_i32_0 : i32, i32, i32
  }
  func.func @transform_4(%arg0: i32, %arg1: i32, %arg2: i32) -> (i32, i32, i32) {
    %c0_i32 = arith.constant 0 : i32
    %c0_i32_0 = arith.constant 0 : i32
    %c0_i32_1 = arith.constant 0 : i32
    return %arg0, %c0_i32, %c0_i32_0 : i32, i32, i32
  }
  func.func @transform_5(%arg0: i32, %arg1: i32, %arg2: i32) -> (i32, i32) {
    %c0_i32 = arith.constant 0 : i32
    %c0_i32_0 = arith.constant 0 : i32
    return %arg1, %c0_i32 : i32, i32
  }
}

</mosaic_0001>

<llo_original>
// kernel: tpu_custom_call.1
$region0: #{tpu_custom_call.1}
  #allocation0 [shape = 'u32[]', space=smem, size = 0x4, offset = 0x4, fixed_abs, tag = 'smem constant byte address 0x4 - core index']
  #allocation1 [shape = 'u32[144,128]{1,0:T(1,128)}', space=vmem, size = 0x12000, scoped, tag = 'internal scratch']
  #allocation2 [shape = 'bf16[2,128,128]{2,1,0:T(8,128)(2,1)}', space=vmem, size = 0x10000, scoped, tag = 'scratch operand']
  #allocation3 [shape = 'f32[128,128]{1,0:T(8,128)}', space=vmem, size = 0x10000, scoped, tag = 'scratch operand']
  #allocation4 [shape = 'f32[128,1]{1,0:T(8,128)}', space=vmem, size = 0x10000, scoped, tag = 'scratch operand']
  #allocation13 [shape = 's32[]', space=sflag, size = 0x4, offset = 0, fixed_abs, tag = 'sflag constant byte address 0x0 - dummy sync flag']
  #allocation14 [shape = 's32[]', space=sflag, size = 0x4, offset = 0, fixed_abs, tag = 'sflag constant byte address 0x0 - dummy sync flag']
  #allocation15 [shape = 'u32[]', space=smem, size = 0x4, offset = 0x44, fixed_abs, tag = 'smem constant byte address 0x44 - assertion arg 0']
  #allocation16 [shape = 'u32[]', space=smem, size = 0x4, offset = 0x48, fixed_abs, tag = 'smem constant byte address 0x48 - assertion arg 1']
  %s0 = inlined_call_operand.hbm [shape: bf16[128,128], index: 0, kind: input, shape index: {}]
  %s1 = inlined_call_operand.hbm [shape: s8[128,128], index: 1, kind: input, shape index: {}]
  %s2 = inlined_call_operand.hbm [shape: bf16[3,128,128], index: 2, kind: input, shape index: {}]
  %s3 = inlined_call_operand.hbm [shape: bf16[3,128,128], index: 3, kind: input, shape index: {}]
  %s4 = inlined_call_operand.vmem [shape: f32[3,1,128], index: 4, kind: input, shape index: {}]
  %s5 = inlined_call_operand.hbm [shape: f32[128,128], index: 5, kind: output, shape index: {}]
  %s6 = sld [smem:[#allocation0]]
  $region86: #{tpu_custom_call.1} parent=0
    _
  %s8 = ssub.s32 1, %s6
  %s9 = scalar_select 0, %s8, %s6
  $region1: #{tpu_custom_call.1} parent=0
    #allocation5 [shape = 'u8[16384]{0}', space=vmem, size = 0x4000, scoped, tag = 'input window, operand 1, single buffered']
    #allocation6 [shape = 's32[2]{0}', space=sflag, size = 0x8, scoped, tag = 'scoped memory for tpu_custom_call.1']
    #allocation7 [shape = 's32[2]{0}', space=sflag, size = 0x8, scoped, tag = 'scoped memory for tpu_custom_call.1']
    #allocation8 [shape = 'u8[65536]{0}', space=vmem, size = 0x10000, scoped, tag = 'input window, operand 2']
    #allocation9 [shape = 's32[2]{0}', space=sflag, size = 0x8, scoped, tag = 'scoped memory for tpu_custom_call.1']
    #allocation10 [shape = 'u8[65536]{0}', space=vmem, size = 0x10000, scoped, tag = 'input window, operand 3']
    #allocation11 [shape = 'u8[65536]{0}', space=vmem, size = 0x10000, scoped, tag = 'output window, operand 0, single buffered']
    %10 = vsyncpa [#allocation6], 0
    %11 = vsyncpa [#allocation9], 0
    %s12 = scalar_lea.sflag [#allocation9], 1
    %13 = vsyncpa %s12, 0
    %14 = vsyncpa [#allocation7], 0
    loop: start=0, step=1, limit=5
    $region2: #{tpu_custom_call.1} parent=1 // loop_pre_header
      _
    $region3: #{tpu_custom_call.1} parent=1 // loop_header
      %s16 = sphi 0, %s20
      %p17 = scmp.ge.s32.totalorder %s16, 5
      %s23 = sphi 0, %s42
      %s24 = sphi 0, %s38
      %s25 = sphi 0, %s34
      %s26 = sphi 0, %s23
      %s27 = sphi 0, %s24
      %s28 = sphi 0, %s25
      %s29 = sphi 0, %s26
      %s30 = sphi 0, %s27
      %s31 = sphi 0, %s28
      %s43 = sphi 0, %s43
      %s45 = sphi 0, %s43
      %s46 = sphi 0, %s45
      %s60 = sphi 0, %s46
      %s66 = sphi 0, %s68
      %s69 = sphi 0, %s66
      %s70 = sphi 0, %s69
      %s86 = sphi 0, %s70
      %s92 = sphi 0, %s94
      %s95 = sphi 0, %s92
      %s96 = sphi 0, %s95
      %s112 = sphi 0, %s96
      %s118 = sphi 0, %s120
      %s121 = sphi 0, %s118
      %s122 = sphi 0, %s121
      %s138 = sphi 0, %s122
      %s144 = sphi 0, %s146
      %s147 = sphi 0, %s144
      %s148 = sphi 0, %s147
      %s164 = sphi 0, %s148
    $region4: #{tpu_custom_call.1} parent=1 // loop_header_branch
      %19 = sbr.rel (%p17) target = $region8
    $region5: #{tpu_custom_call.1} parent=1 // loop_body
      %s21 = ssub.s32 %s16, 1
      %s22 = ssub.s32 %s16, 2
      %s32 = sadd.s32 1, %s25
      %p33 = scmp.ge.s32.totalorder %s32, 1
      %s34 = scalar_select %p33, 0, %s32
      %s35 = sadd.s32 1, %s24
      %s36 = scalar_select %p33, %s35, %s24
      %p37 = scmp.ge.s32.totalorder %s36, 1
      %s38 = scalar_select %p37, 0, %s36
      %s39 = sadd.s32 1, %s23
      %s40 = scalar_select %p37, %s39, %s23
      %p41 = scmp.ge.s32.totalorder %s40, 3
      %s42 = scalar_select %p41, 0, %s40
      %s44 = sadd.s32 %s43, 1
      %p47 = scmp.eq.s32.totalorder %s16, 2
      %p48 = scmp.ne.s32.totalorder %s43, %s45
      %p49 = scmp.eq.s32.totalorder %s16, 0
      %p50 = por %p48, %p49
      %p51 = scmp.ne.s32.totalorder %s43, %s45
      %p52 = scmp.eq.s32.totalorder %s21, 2
      %p53 = por %p51, %p52
      %p54 = scmp.ne.s32.totalorder %s45, %s46
      %p55 = scmp.eq.s32.totalorder %s21, 0
      %p56 = por %p54, %p55
      %p57 = scmp.ne.s32.totalorder %s45, %s46
      %p58 = scmp.eq.s32.totalorder %s22, 2
      %p59 = por %p57, %p58
      %p61 = scmp.ne.s32.totalorder %s46, %s60
      %p62 = scmp.eq.s32.totalorder %s22, 0
      %p63 = por %p61, %p62
      %s64 = ssub.s32 %s23, %s42
      %p65 = scmp.eq.s32.totalorder %s64, 0
      %s67 = sadd.s32 %s66, 1
      %s68 = scalar_select %p65, %s66, %s67
      %p71 = pneg %p65
      %p72 = scmp.eq.s32.totalorder %s16, 2
      %p73 = por %p71, %p72
      %p74 = scmp.ne.s32.totalorder %s66, %s69
      %p75 = scmp.eq.s32.totalorder %s16, 0
      %p76 = por %p74, %p75
      %p77 = scmp.ne.s32.totalorder %s66, %s69
      %p78 = scmp.eq.s32.totalorder %s21, 2
      %p79 = por %p77, %p78
      %p80 = scmp.ne.s32.totalorder %s69, %s70
      %p81 = scmp.eq.s32.totalorder %s21, 0
      %p82 = por %p80, %p81
      %p83 = scmp.ne.s32.totalorder %s69, %s70
      %p84 = scmp.eq.s32.totalorder %s22, 2
      %p85 = por %p83, %p84
      %p87 = scmp.ne.s32.totalorder %s70, %s86
      %p88 = scmp.eq.s32.totalorder %s22, 0
      %p89 = por %p87, %p88
      %s90 = ssub.s32 %s23, %s42
      %p91 = scmp.eq.s32.totalorder %s90, 0
      %s93 = sadd.s32 %s92, 1
      %s94 = scalar_select %p91, %s92, %s93
      %p97 = pneg %p91
      %p98 = scmp.eq.s32.totalorder %s16, 2
      %p99 = por %p97, %p98
      %p100 = scmp.ne.s32.totalorder %s92, %s95
      %p101 = scmp.eq.s32.totalorder %s16, 0
      %p102 = por %p100, %p101
      %p103 = scmp.ne.s32.totalorder %s92, %s95
      %p104 = scmp.eq.s32.totalorder %s21, 2
      %p105 = por %p103, %p104
      %p106 = scmp.ne.s32.totalorder %s95, %s96
      %p107 = scmp.eq.s32.totalorder %s21, 0
      %p108 = por %p106, %p107
      %p109 = scmp.ne.s32.totalorder %s95, %s96
      %p110 = scmp.eq.s32.totalorder %s22, 2
      %p111 = por %p109, %p110
      %p113 = scmp.ne.s32.totalorder %s96, %s112
      %p114 = scmp.eq.s32.totalorder %s22, 0
      %p115 = por %p113, %p114
      %s116 = ssub.s32 %s23, %s42
      %p117 = scmp.eq.s32.totalorder %s116, 0
      %s119 = sadd.s32 %s118, 1
      %s120 = scalar_select %p117, %s118, %s119
      %p123 = pneg %p117
      %p124 = scmp.eq.s32.totalorder %s16, 2
      %p125 = por %p123, %p124
      %p126 = scmp.ne.s32.totalorder %s118, %s121
      %p127 = scmp.eq.s32.totalorder %s16, 0
      %p128 = por %p126, %p127
      %p129 = scmp.ne.s32.totalorder %s118, %s121
      %p130 = scmp.eq.s32.totalorder %s21, 2
      %p131 = por %p129, %p130
      %p132 = scmp.ne.s32.totalorder %s121, %s122
      %p133 = scmp.eq.s32.totalorder %s21, 0
      %p134 = por %p132, %p133
      %p135 = scmp.ne.s32.totalorder %s121, %s122
      %p136 = scmp.eq.s32.totalorder %s22, 2
      %p137 = por %p135, %p136
      %p139 = scmp.ne.s32.totalorder %s122, %s138
      %p140 = scmp.eq.s32.totalorder %s22, 0
      %p141 = por %p139, %p140
      %s142 = ssub.s32 %s24, %s38
      %p143 = scmp.eq.s32.totalorder %s142, 0
      %s145 = sadd.s32 %s144, 1
      %s146 = scalar_select %p143, %s144, %s145
      %p149 = pneg %p143
      %p150 = scmp.eq.s32.totalorder %s16, 2
      %p151 = por %p149, %p150
      %p152 = scmp.ne.s32.totalorder %s144, %s147
      %p153 = scmp.eq.s32.totalorder %s16, 0
      %p154 = por %p152, %p153
      %p155 = scmp.ne.s32.totalorder %s144, %s147
      %p156 = scmp.eq.s32.totalorder %s21, 2
      %p157 = por %p155, %p156
      %p158 = scmp.ne.s32.totalorder %s147, %s148
      %p159 = scmp.eq.s32.totalorder %s21, 0
      %p160 = por %p158, %p159
      %p161 = scmp.ne.s32.totalorder %s147, %s148
      %p162 = scmp.eq.s32.totalorder %s22, 2
      %p163 = por %p161, %p162
      %p165 = scmp.ne.s32.totalorder %s148, %s164
      %p166 = scmp.eq.s32.totalorder %s22, 0
      %p167 = por %p165, %p166
      %p168 = scmp.le.s32.totalorder 1, %s16
      %p169 = scmp.lt.s32.totalorder %s16, 4
      %p170 = pnand %p168, %p169
      %p171 = pneg %p170
      // Predicated region
      $region9: #{tpu_custom_call.1} parent=5 // pred_check
        _
      $region10: #{tpu_custom_call.1} parent=5 // pred_check_branch
        %173 = sbr.rel (%p170) target = $region12
      $region11: #{tpu_custom_call.1} parent=5 // pred_region
        %s174 = ssub.s32 %s16, 1
        // Predicated region
        $region13: #{tpu_custom_call.1} parent=11 // pred_check
          %p175 = pneg %p56
        $region14: #{tpu_custom_call.1} parent=11 // pred_check_branch
          %177 = sbr.rel (%p175) target = $region16
        $region15: #{tpu_custom_call.1} parent=11 // pred_region
          %s179 = ssub.s32 512, 512
          %180 = vsyncadd [#allocation6], %s179
          %s181 = sshll.u32 [#allocation5], 4
          %s182 = int_to_ptr.vmem [resolvable:$true] %s181
          %187 = dma.hbm_to_vmem [thread:$0]  %s1, 512, %s182, [#allocation6], 128, 128, 8
        $region16: #{tpu_custom_call.1} parent=11 // pred_fallthru
          _
      $region12: #{tpu_custom_call.1} parent=5 // pred_fallthru
        _
      %p188 = scmp.lt.s32.totalorder %s16, 3
      // Predicated region
      $region17: #{tpu_custom_call.1} parent=5 // pred_check
        %p189 = pneg %p188
      $region18: #{tpu_custom_call.1} parent=5 // pred_check_branch
        %191 = sbr.rel (%p189) target = $region20
      $region19: #{tpu_custom_call.1} parent=5 // pred_region
        // Predicated region
        $region21: #{tpu_custom_call.1} parent=19 // pred_check
          %p192 = pneg %p76
        $region22: #{tpu_custom_call.1} parent=19 // pred_check_branch
          %194 = sbr.rel (%p192) target = $region24
        $region23: #{tpu_custom_call.1} parent=19 // pred_region
          %s195 = sand.u32 %s16, 1
          %s196 = scalar_lea.sflag [#allocation9], %s195
          %s197 = sand.u32 %s66, 1
          %s198 = smul.addr %s197, 64
          %s199 = scalar_lea.vmem [#allocation8], %s198
          %s201 = ssub.s32 1024, 1024
          %202 = vsyncadd %s196, %s201
          %s203 = smul.addr %s23, 16
          %s204 = smul.addr %s203, 64
          %s205 = scalar_lea.hbm %s2, %s204
          %s206 = sshll.u32 %s199, 4
          %s207 = int_to_ptr.vmem [resolvable:$true] %s206
          %212 = dma.hbm_to_vmem [thread:$0]  %s205, 1024, %s207, %s196, 64, 64, 4
        $region24: #{tpu_custom_call.1} parent=19 // pred_fallthru
          _
        // Predicated region
        $region25: #{tpu_custom_call.1} parent=19 // pred_check
          %p213 = pneg %p102
        $region26: #{tpu_custom_call.1} parent=19 // pred_check_branch
          %215 = sbr.rel (%p213) target = $region28
        $region27: #{tpu_custom_call.1} parent=19 // pred_region
          %s216 = sand.u32 %s16, 1
          %s217 = scalar_lea.sflag [#allocation9], %s216
          %s218 = sand.u32 %s92, 1
          %s219 = smul.addr %s218, 64
          %s220 = scalar_lea.vmem [#allocation10], %s219
          %s222 = ssub.s32 1024, 1024
          %223 = vsyncadd %s217, %s222
          %s224 = smul.addr %s23, 16
          %s225 = smul.addr %s224, 64
          %s226 = scalar_lea.hbm %s3, %s225
          %s227 = sshll.u32 %s220, 4
          %s228 = int_to_ptr.vmem [resolvable:$true] %s227
          %233 = dma.hbm_to_vmem [thread:$0]  %s226, 1024, %s228, %s217, 64, 64, 4
        $region28: #{tpu_custom_call.1} parent=19 // pred_fallthru
          _
        // Predicated region
        $region29: #{tpu_custom_call.1} parent=19 // pred_check
          %p234 = pneg %p128
        $region30: #{tpu_custom_call.1} parent=19 // pred_check_branch
          %236 = sbr.rel (%p234) target = $region32
        $region31: #{tpu_custom_call.1} parent=19 // pred_region
          %p237 = scmp.lt.s32.totalorder %s23, 2
          %s238 = scalar_select %p237, %s23, 2
          %s239 = scalar_lea.vmem %s4, %s238
        $region32: #{tpu_custom_call.1} parent=19 // pred_fallthru
          _
      $region20: #{tpu_custom_call.1} parent=5 // pred_fallthru
        _
      %p240 = scmp.le.s32.totalorder 1, %s16
      %p241 = scmp.lt.s32.totalorder %s16, 4
      %p242 = pnand %p240, %p241
      %p243 = pneg %p242
      // Predicated region
      $region33: #{tpu_custom_call.1} parent=5 // pred_check
        _
      $region34: #{tpu_custom_call.1} parent=5 // pred_check_branch
        %245 = sbr.rel (%p242) target = $region36
      $region35: #{tpu_custom_call.1} parent=5 // pred_region
        %s246 = ssub.s32 %s16, 1
        // Predicated region
        $region37: #{tpu_custom_call.1} parent=35 // pred_check
          %p247 = pneg %p56
        $region38: #{tpu_custom_call.1} parent=35 // pred_check_branch
          %249 = sbr.rel (%p247) target = $region40
        $region39: #{tpu_custom_call.1} parent=35 // pred_region
          %250 = dma.done [#allocation6], 512
        $region40: #{tpu_custom_call.1} parent=35 // pred_fallthru
          _
        %s251 = sand.u32 %s21, 1
        %s252 = scalar_lea.sflag [#allocation9], %s251
        %s253 = sand.u32 %s69, 1
        %s254 = smul.addr %s253, 64
        %s255 = scalar_lea.vmem [#allocation8], %s254
        // Predicated region
        $region41: #{tpu_custom_call.1} parent=35 // pred_check
          %p256 = pneg %p82
        $region42: #{tpu_custom_call.1} parent=35 // pred_check_branch
          %258 = sbr.rel (%p256) target = $region44
        $region43: #{tpu_custom_call.1} parent=35 // pred_region
          %259 = dma.done %s252, 1024
        $region44: #{tpu_custom_call.1} parent=35 // pred_fallthru
          _
        %s260 = sand.u32 %s21, 1
        %s261 = scalar_lea.sflag [#allocation9], %s260
        %s262 = sand.u32 %s95, 1
        %s263 = smul.addr %s262, 64
        %s264 = scalar_lea.vmem [#allocation10], %s263
        // Predicated region
        $region45: #{tpu_custom_call.1} parent=35 // pred_check
          %p265 = pneg %p108
        $region46: #{tpu_custom_call.1} parent=35 // pred_check_branch
          %267 = sbr.rel (%p265) target = $region48
        $region47: #{tpu_custom_call.1} parent=35 // pred_region
          %268 = dma.done %s261, 1024
        $region48: #{tpu_custom_call.1} parent=35 // pred_fallthru
          _
        %p269 = pneg %p56
        %p270 = pneg %p53
        %s271 = sand.u32 %s21, 1
        %s272 = scalar_lea.sflag [#allocation9], %s271
        %s273 = sand.u32 %s69, 1
        %s274 = smul.addr %s273, 64
        %s275 = scalar_lea.vmem [#allocation8], %s274
        %p276 = pneg %p82
        %p277 = pneg %p79
        %s278 = sand.u32 %s21, 1
        %s279 = scalar_lea.sflag [#allocation9], %s278
        %s280 = sand.u32 %s95, 1
        %s281 = smul.addr %s280, 64
        %s282 = scalar_lea.vmem [#allocation10], %s281
        %p283 = pneg %p108
        %p284 = pneg %p105
        %p285 = scmp.lt.s32.totalorder %s26, 2
        %s286 = scalar_select %p285, %s26, 2
        %s287 = scalar_lea.vmem %s4, %s286
        %p288 = pneg %p134
        %p289 = pneg %p131
        %p290 = pneg %p160
        %p291 = pneg %p157
        %p292 = scmp.lt.s32.totalorder %s26, 2
        %s293 = scalar_select %p292, %s26, 2
        %s294 = scalar_lea.vmem %s4, %s293
        %s295 = smul.u32 16, %s27
        %s297 = smul.u32 %s27, 128
        %s298 = smul.u32 %s28, 128
        %p299 = scmp.eq.s32.totalorder %s26, 0
        %p300 = scmp.eq.s32.totalorder %s27, 0
        %p301 = pnand %p299, %p300
        %p302 = pneg %p301
        %p303 = scmp.eq.s32.totalorder %s28, 0
        %p304 = pnand %p302, %p303
        %p305 = pneg %p304
        // Predicated region
        $region49: #{tpu_custom_call.1} parent=35 // pred_check
          _
        $region50: #{tpu_custom_call.1} parent=35 // pred_check_branch
          %307 = sbr.rel (%p304) target = $region52
        $region51: #{tpu_custom_call.1} parent=35 // pred_region
          $region53: #{tpu_custom_call.1} parent=51
            #allocation12 [shape = 's32[1]{0}', space=sflag, size = 0x4, scoped, tag = 'scoped memory for tpu_custom_call.1']
            // Predicated region
            $region54: #{tpu_custom_call.1} parent=53 // pred_check
              _
            $region55: #{tpu_custom_call.1} parent=53 // pred_check_branch
              %309 = sbr.rel target = $region57
            $region56: #{tpu_custom_call.1} parent=53 // pred_region
              %310 = sst [smem:[#allocation15]] [#allocation14]
              %311 = sst [smem:[#allocation16]] [#allocation13]
            $region57: #{tpu_custom_call.1} parent=53 // pred_fallthru
              _
            %313 = shalt.err (0)
            %s315 = sshll.u32 [#allocation2], 4
            %s316 = int_to_ptr.vmem [resolvable:$true] %s315
            %318 = dma.hbm_to_vmem [thread:$0]  %s0, 1024, %s316, [#allocation12]
            %s319 = smul.u32 4, 16
            %s320 = smul.u32 %s319, 1
            %s321 = sshll.u32 %s320, 4
            %322 = dma.done [#allocation12], %s321
        $region52: #{tpu_custom_call.1} parent=35 // pred_fallthru
          _
        // Predicated region
        $region58: #{tpu_custom_call.1} parent=35 // pred_check
          %p323 = pneg %p303
        $region59: #{tpu_custom_call.1} parent=35 // pred_check_branch
          %325 = sbr.rel (%p323) target = $region61
        $region60: #{tpu_custom_call.1} parent=35 // pred_region
          %326 = vst [vmem:[#allocation3] sm:$0xff] 0.0
          %327 = vst [vmem:[#allocation3 + $0x8] sm:$0xff] 0.0
          %328 = vst [vmem:[#allocation3 + $0x10] sm:$0xff] 0.0
          %329 = vst [vmem:[#allocation3 + $0x18] sm:$0xff] 0.0
          %330 = vst [vmem:[#allocation3 + $0x20] sm:$0xff] 0.0
          %331 = vst [vmem:[#allocation3 + $0x28] sm:$0xff] 0.0
          %332 = vst [vmem:[#allocation3 + $0x30] sm:$0xff] 0.0
          %333 = vst [vmem:[#allocation3 + $0x38] sm:$0xff] 0.0
          %334 = vst [vmem:[#allocation3 + $0x40] sm:$0xff] 0.0
          %335 = vst [vmem:[#allocation3 + $0x48] sm:$0xff] 0.0
          %336 = vst [vmem:[#allocation3 + $0x50] sm:$0xff] 0.0
          %337 = vst [vmem:[#allocation3 + $0x58] sm:$0xff] 0.0
          %338 = vst [vmem:[#allocation3 + $0x60] sm:$0xff] 0.0
          %339 = vst [vmem:[#allocation3 + $0x68] sm:$0xff] 0.0
          %340 = vst [vmem:[#allocation3 + $0x70] sm:$0xff] 0.0
          %341 = vst [vmem:[#allocation3 + $0x78] sm:$0xff] 0.0
        $region61: #{tpu_custom_call.1} parent=35 // pred_fallthru
          _
        %p342 = scmp.lt.s32.totalorder %s26, 0
        %s343 = ssub.s32 0, %s26
        %s344 = scalar_select %p342, %s343, %s26
        %s345 = sand.u32 %s344, 1
        %s346 = ssub.s32 0, %s345
        %s347 = scalar_select %p342, %s346, %s345
        %p348 = scmp.ne.s32.totalorder %s347, 0
        %p349 = scmp.lt.s32.totalorder %s347, 0
        %p350 = pnand %p349, %p348
        %p351 = pneg %p350
        %s352 = sadd.s32 %s347, 2
        %s353 = scalar_select %p351, %s352, %s347
        %s354 = sshra.s32 %s298, 7
        %s355 = sand.u32 %s298, 127
        %s356 = sshra.s32 %s297, 5
        %s357 = sand.u32 %s297, 31
        %s358 = sadd.s32 %s354, %s356
        %s359 = smul.addr %s358, 8
        %s360 = scalar_lea.vmem [#allocation5], %s359
        %v361 = vld [vmem:[%s360] sm:$0xff]
        %v362 = vld [vmem:[%s360 + $0x8] sm:$0xff]
        %v363 = vld [vmem:[%s360 + $0x10] sm:$0xff]
        %v364 = vld [vmem:[%s360 + $0x18] sm:$0xff]
        %v365 = vunpack.c.l.s8.bf16 %v361
        %v366 = vunpack.c.h.s8.bf16 %v361
        %v367 = vunpack.c.l.s8.bf16 %v362
        %v368 = vunpack.c.h.s8.bf16 %v362
        %v369 = vunpack.c.l.s8.bf16 %v363
        %v370 = vunpack.c.h.s8.bf16 %v363
        %v371 = vunpack.c.l.s8.bf16 %v364
        %v372 = vunpack.c.h.s8.bf16 %v364
        %s373 = smul.u32 %s353, 16
        %s374 = smul.addr %s373, 4
        %s375 = scalar_lea.vmem [#allocation2], %s374
        %s376 = sshra.s32 %s298, 3
        %s377 = sand.u32 %s298, 7
        %s378 = smul.addr %s376, 4
        %s379 = scalar_lea.vmem %s375, %s378 [#allocation2]
        %v380 = vld [vmem:[%s379] sm:$0xf]
        %v381 = vld [vmem:[%s379 + $0x4] sm:$0xf]
        %v382 = vld [vmem:[%s379 + $0x8] sm:$0xf]
        %v383 = vld [vmem:[%s379 + $0xc] sm:$0xf]
        %v384 = vld [vmem:[%s379 + $0x10] sm:$0xf]
        %v385 = vld [vmem:[%s379 + $0x14] sm:$0xf]
        %v386 = vld [vmem:[%s379 + $0x18] sm:$0xf]
        %v387 = vld [vmem:[%s379 + $0x1c] sm:$0xf]
        %v388 = vld [vmem:[%s379 + $0x20] sm:$0xf]
        %v389 = vld [vmem:[%s379 + $0x24] sm:$0xf]
        %v390 = vld [vmem:[%s379 + $0x28] sm:$0xf]
        %v391 = vld [vmem:[%s379 + $0x2c] sm:$0xf]
        %v392 = vld [vmem:[%s379 + $0x30] sm:$0xf]
        %v393 = vld [vmem:[%s379 + $0x34] sm:$0xf]
        %v394 = vld [vmem:[%s379 + $0x38] sm:$0xf]
        %v395 = vld [vmem:[%s379 + $0x3c] sm:$0xf]
        %v396 = vld [vmem:[#allocation3] sm:$0xff]
        %v397 = vld [vmem:[#allocation3 + $0x8] sm:$0xff]
        %v398 = vld [vmem:[#allocation3 + $0x10] sm:$0xff]
        %v399 = vld [vmem:[#allocation3 + $0x18] sm:$0xff]
        %v400 = vld [vmem:[#allocation3 + $0x20] sm:$0xff]
        %v401 = vld [vmem:[#allocation3 + $0x28] sm:$0xff]
        %v402 = vld [vmem:[#allocation3 + $0x30] sm:$0xff]
        %v403 = vld [vmem:[#allocation3 + $0x38] sm:$0xff]
        %v404 = vld [vmem:[#allocation3 + $0x40] sm:$0xff]
        %v405 = vld [vmem:[#allocation3 + $0x48] sm:$0xff]
        %v406 = vld [vmem:[#allocation3 + $0x50] sm:$0xff]
        %v407 = vld [vmem:[#allocation3 + $0x58] sm:$0xff]
        %v408 = vld [vmem:[#allocation3 + $0x60] sm:$0xff]
        %v409 = vld [vmem:[#allocation3 + $0x68] sm:$0xff]
        %v410 = vld [vmem:[#allocation3 + $0x70] sm:$0xff]
        %v411 = vld [vmem:[#allocation3 + $0x78] sm:$0xff]
        %v428 = vunpack.c.l.b16 %v380
        %v429 = vunpack.c.l.b16 %v381
        %v430 = vunpack.c.l.b16 %v382
        %v431 = vunpack.c.l.b16 %v383
        %v432 = vunpack.c.l.b16 %v384
        %v433 = vunpack.c.l.b16 %v385
        %v434 = vunpack.c.l.b16 %v386
        %v435 = vunpack.c.l.b16 %v387
        %v436 = vunpack.c.l.b16 %v388
        %v437 = vunpack.c.l.b16 %v389
        %v438 = vunpack.c.l.b16 %v390
        %v439 = vunpack.c.l.b16 %v391
        %v440 = vunpack.c.l.b16 %v392
        %v441 = vunpack.c.l.b16 %v393
        %v442 = vunpack.c.l.b16 %v394
        %v443 = vunpack.c.l.b16 %v395
        %v444 = vpack.c.b16 %v429, %v428
        %v445 = vpack.c.b16 %v431, %v430
        %v446 = vpack.c.b16 %v433, %v432
        %v447 = vpack.c.b16 %v435, %v434
        %v448 = vpack.c.b16 %v437, %v436
        %v449 = vpack.c.b16 %v439, %v438
        %v450 = vpack.c.b16 %v441, %v440
        %v451 = vpack.c.b16 %v443, %v442
        %460 = vmatprep.subr.bf16.mxu0 0
        %461 = vmatpush1.bf16.msra.mxu0 %v451
        %462 = vmatprep.subr.bf16.mxu0 0
        %463 = vmatpush1.bf16.msra.mxu0 %v450
        %464 = vmatprep.subr.bf16.mxu0 0
        %465 = vmatpush1.bf16.msra.mxu0 %v449
        %466 = vmatprep.subr.bf16.mxu0 0
        %467 = vmatpush1.bf16.msra.mxu0 %v448
        %468 = vmatprep.subr.bf16.mxu0 0
        %469 = vmatpush1.bf16.msra.mxu0 %v447
        %470 = vmatprep.subr.bf16.mxu0 0
        %471 = vmatpush1.bf16.msra.mxu0 %v446
        %472 = vmatprep.subr.bf16.mxu0 0
        %473 = vmatpush1.bf16.msra.mxu0 %v445
        %474 = vmatprep.subr.bf16.mxu0 0
        %475 = vmatpush1.bf16.msra.mxu0 %v444
        %476 = vmatprep.subr.bf16.mxu0 0
        %477 = vmatpush2.bf16.msra.mxu0 0
        %478 = vmatprep.subr.bf16.mxu0 0
        %479 = vmatpush2.bf16.msra.mxu0 0
        %480 = vmatprep.subr.bf16.mxu0 0
        %481 = vmatpush2.bf16.msra.mxu0 0
        %482 = vmatprep.subr.bf16.mxu0 0
        %483 = vmatpush2.bf16.msra.mxu0 0
        %484 = vmatprep.subr.bf16.mxu0 0
        %485 = vmatpush2.bf16.msra.mxu0 0
        %486 = vmatprep.subr.bf16.mxu0 0
        %487 = vmatpush2.bf16.msra.mxu0 0
        %488 = vmatprep.subr.bf16.mxu0 0
        %489 = vmatpush2.bf16.msra.mxu0 0
        %490 = vmatprep.subr.bf16.mxu0 0
        %491 = vmatpush2.bf16.msra.mxu0 0
        %492 = vmatprep.mubr.bf16.mxu0 0
        %493 = vmatmul.mubr.bf16.gmra.mxu0 %v365
        %v494 = vpop.f32.mrf.mxu0
        %v495 = vadd.f32 0.0, %v494
        %v496 = vpop.f32.mrf.mxu0
        %v497 = vpop.f32.mrf.mxu0
        %v498 = vadd.f32 0.0, %v497
        %v499 = vpop.f32.mrf.mxu0
        %500 = vmatprep.mubr.bf16.mxu0 0
        %501 = vmatmul.mubr.bf16.gmra.mxu0 %v366
        %v502 = vpop.f32.mrf.mxu0
        %v503 = vadd.f32 0.0, %v502
        %v504 = vpop.f32.mrf.mxu0
        %v505 = vpop.f32.mrf.mxu0
        %v506 = vadd.f32 0.0, %v505
        %v507 = vpop.f32.mrf.mxu0
        %508 = vmatprep.mubr.bf16.mxu0 0
        %509 = vmatmul.mubr.bf16.gmra.mxu0 %v367
        %v510 = vpop.f32.mrf.mxu0
        %v511 = vadd.f32 0.0, %v510
        %v512 = vpop.f32.mrf.mxu0
        %v513 = vpop.f32.mrf.mxu0
        %v514 = vadd.f32 0.0, %v513
        %v515 = vpop.f32.mrf.mxu0
        %516 = vmatprep.mubr.bf16.mxu0 0
        %517 = vmatmul.mubr.bf16.gmra.mxu0 %v368
        %v518 = vpop.f32.mrf.mxu0
        %v519 = vadd.f32 0.0, %v518
        %v520 = vpop.f32.mrf.mxu0
        %v521 = vpop.f32.mrf.mxu0
        %v522 = vadd.f32 0.0, %v521
        %v523 = vpop.f32.mrf.mxu0
        %524 = vmatprep.mubr.bf16.mxu0 0
        %525 = vmatmul.mubr.bf16.gmra.mxu0 %v369
        %v526 = vpop.f32.mrf.mxu0
        %v527 = vadd.f32 0.0, %v526
        %v528 = vpop.f32.mrf.mxu0
        %v529 = vpop.f32.mrf.mxu0
        %v530 = vadd.f32 0.0, %v529
        %v531 = vpop.f32.mrf.mxu0
        %532 = vmatprep.mubr.bf16.mxu0 0
        %533 = vmatmul.mubr.bf16.gmra.mxu0 %v370
        %v534 = vpop.f32.mrf.mxu0
        %v535 = vadd.f32 0.0, %v534
        %v536 = vpop.f32.mrf.mxu0
        %v537 = vpop.f32.mrf.mxu0
        %v538 = vadd.f32 0.0, %v537
        %v539 = vpop.f32.mrf.mxu0
        %540 = vmatprep.mubr.bf16.mxu0 0
        %541 = vmatmul.mubr.bf16.gmra.mxu0 %v371
        %v542 = vpop.f32.mrf.mxu0
        %v543 = vadd.f32 0.0, %v542
        %v544 = vpop.f32.mrf.mxu0
        %v545 = vpop.f32.mrf.mxu0
        %v546 = vadd.f32 0.0, %v545
        %v547 = vpop.f32.mrf.mxu0
        %548 = vmatprep.mubr.bf16.mxu0 0
        %549 = vmatmul.mubr.bf16.gmra.mxu0 %v372
        %v550 = vpop.f32.mrf.mxu0
        %v551 = vadd.f32 0.0, %v550
        %v552 = vpop.f32.mrf.mxu0
        %v553 = vpop.f32.mrf.mxu0
        %v554 = vadd.f32 0.0, %v553
        %v555 = vpop.f32.mrf.mxu0
        %556 = vdwg.mxu0
        %v557 = vadd.f32 %v396, %v495
        %v558 = vadd.f32 %v397, %v498
        %v559 = vadd.f32 %v398, %v503
        %v560 = vadd.f32 %v399, %v506
        %v561 = vadd.f32 %v400, %v511
        %v562 = vadd.f32 %v401, %v514
        %v563 = vadd.f32 %v402, %v519
        %v564 = vadd.f32 %v403, %v522
        %v565 = vadd.f32 %v404, %v527
        %v566 = vadd.f32 %v405, %v530
        %v567 = vadd.f32 %v406, %v535
        %v568 = vadd.f32 %v407, %v538
        %v569 = vadd.f32 %v408, %v543
        %v570 = vadd.f32 %v409, %v546
        %v571 = vadd.f32 %v410, %v551
        %v572 = vadd.f32 %v411, %v554
        %573 = vst [vmem:[#allocation3] sm:$0xff] %v557
        %574 = vst [vmem:[#allocation3 + $0x8] sm:$0xff] %v558
        %575 = vst [vmem:[#allocation3 + $0x10] sm:$0xff] %v559
        %576 = vst [vmem:[#allocation3 + $0x18] sm:$0xff] %v560
        %577 = vst [vmem:[#allocation3 + $0x20] sm:$0xff] %v561
        %578 = vst [vmem:[#allocation3 + $0x28] sm:$0xff] %v562
        %579 = vst [vmem:[#allocation3 + $0x30] sm:$0xff] %v563
        %580 = vst [vmem:[#allocation3 + $0x38] sm:$0xff] %v564
        %581 = vst [vmem:[#allocation3 + $0x40] sm:$0xff] %v565
        %582 = vst [vmem:[#allocation3 + $0x48] sm:$0xff] %v566
        %583 = vst [vmem:[#allocation3 + $0x50] sm:$0xff] %v567
        %584 = vst [vmem:[#allocation3 + $0x58] sm:$0xff] %v568
        %585 = vst [vmem:[#allocation3 + $0x60] sm:$0xff] %v569
        %586 = vst [vmem:[#allocation3 + $0x68] sm:$0xff] %v570
        %587 = vst [vmem:[#allocation3 + $0x70] sm:$0xff] %v571
        %588 = vst [vmem:[#allocation3 + $0x78] sm:$0xff] %v572
        // Predicated region
        $region62: #{tpu_custom_call.1} parent=35 // pred_check
          %p589 = pneg %p303
        $region63: #{tpu_custom_call.1} parent=35 // pred_check_branch
          %591 = sbr.rel (%p589) target = $region65
        $region64: #{tpu_custom_call.1} parent=35 // pred_region
          // Predicated region
          $region66: #{tpu_custom_call.1} parent=64 // pred_check
            %p592 = pneg %p299
          $region67: #{tpu_custom_call.1} parent=64 // pred_check_branch
            %594 = sbr.rel (%p592) target = $region69
          $region68: #{tpu_custom_call.1} parent=64 // pred_region
            %v595 = vld [vmem:[#allocation3] sm:$0xff]
            %v596 = vld [vmem:[#allocation3 + $0x8] sm:$0xff]
            %v597 = vld [vmem:[#allocation3 + $0x10] sm:$0xff]
            %v598 = vld [vmem:[#allocation3 + $0x18] sm:$0xff]
            %v599 = vld [vmem:[#allocation3 + $0x20] sm:$0xff]
            %v600 = vld [vmem:[#allocation3 + $0x28] sm:$0xff]
            %v601 = vld [vmem:[#allocation3 + $0x30] sm:$0xff]
            %v602 = vld [vmem:[#allocation3 + $0x38] sm:$0xff]
            %v603 = vld [vmem:[#allocation3 + $0x40] sm:$0xff]
            %v604 = vld [vmem:[#allocation3 + $0x48] sm:$0xff]
            %v605 = vld [vmem:[#allocation3 + $0x50] sm:$0xff]
            %v606 = vld [vmem:[#allocation3 + $0x58] sm:$0xff]
            %v607 = vld [vmem:[#allocation3 + $0x60] sm:$0xff]
            %v608 = vld [vmem:[#allocation3 + $0x68] sm:$0xff]
            %v609 = vld [vmem:[#allocation3 + $0x70] sm:$0xff]
            %v610 = vld [vmem:[#allocation3 + $0x78] sm:$0xff]
            %v611 = vmax.f32 %v595, 1.0
            %v612 = vmax.f32 %v596, 1.0
            %v613 = vmax.f32 %v597, 1.0
            %v614 = vmax.f32 %v598, 1.0
            %v615 = vmax.f32 %v599, 1.0
            %v616 = vmax.f32 %v600, 1.0
            %v617 = vmax.f32 %v601, 1.0
            %v618 = vmax.f32 %v602, 1.0
            %v619 = vmax.f32 %v603, 1.0
            %v620 = vmax.f32 %v604, 1.0
            %v621 = vmax.f32 %v605, 1.0
            %v622 = vmax.f32 %v606, 1.0
            %v623 = vmax.f32 %v607, 1.0
            %v624 = vmax.f32 %v608, 1.0
            %v625 = vmax.f32 %v609, 1.0
            %v626 = vmax.f32 %v610, 1.0
            %v627 = vrcp.pop %v611
            %v628 = vrcp.pop %v612
            %v629 = vrcp.pop %v613
            %v630 = vrcp.pop %v614
            %v631 = vrcp.pop %v615
            %v632 = vrcp.pop %v616
            %v633 = vrcp.pop %v617
            %v634 = vrcp.pop %v618
            %v635 = vrcp.pop %v619
            %v636 = vrcp.pop %v620
            %v637 = vrcp.pop %v621
            %v638 = vrcp.pop %v622
            %v639 = vrcp.pop %v623
            %v640 = vrcp.pop %v624
            %v641 = vrcp.pop %v625
            %v642 = vrcp.pop %v626
            %659 = vrot.lane.b32.xlu0 %v627, 112
            %v660 = vpop.permute.xlu0 %659
            %661 = vrot.lane.b32.xlu0 %v628, 112
            %v662 = vpop.permute.xlu0 %661
            %663 = vrot.lane.b32.xlu0 %v629, 112
            %v664 = vpop.permute.xlu0 %663
            %665 = vrot.lane.b32.xlu0 %v630, 112
            %v666 = vpop.permute.xlu0 %665
            %667 = vrot.lane.b32.xlu0 %v631, 112
            %v668 = vpop.permute.xlu0 %667
            %669 = vrot.lane.b32.xlu0 %v632, 112
            %v670 = vpop.permute.xlu0 %669
            %671 = vrot.lane.b32.xlu0 %v633, 112
            %v672 = vpop.permute.xlu0 %671
            %673 = vrot.lane.b32.xlu0 %v634, 112
            %v674 = vpop.permute.xlu0 %673
            %675 = vrot.lane.b32.xlu0 %v635, 112
            %v676 = vpop.permute.xlu0 %675
            %677 = vrot.lane.b32.xlu0 %v636, 112
            %v678 = vpop.permute.xlu0 %677
            %679 = vrot.lane.b32.xlu0 %v637, 112
            %v680 = vpop.permute.xlu0 %679
            %681 = vrot.lane.b32.xlu0 %v638, 112
            %v682 = vpop.permute.xlu0 %681
            %683 = vrot.lane.b32.xlu0 %v639, 112
            %v684 = vpop.permute.xlu0 %683
            %685 = vrot.lane.b32.xlu0 %v640, 112
            %v686 = vpop.permute.xlu0 %685
            %687 = vrot.lane.b32.xlu0 %v641, 112
            %v688 = vpop.permute.xlu0 %687
            %689 = vrot.lane.b32.xlu0 %v642, 112
            %v690 = vpop.permute.xlu0 %689
            %s707 = scalar_lea.vmem [#allocation4], %s297
            %vm708 = vcmask 7168
            %709 = vst.msk [vmem:[%s707] sm:$0xff] %vm708, %v660
            %710 = vst.msk [vmem:[%s707 + $0x8] sm:$0xff] %vm708, %v662
            %711 = vst.msk [vmem:[%s707 + $0x10] sm:$0xff] %vm708, %v664
            %712 = vst.msk [vmem:[%s707 + $0x18] sm:$0xff] %vm708, %v666
            %713 = vst.msk [vmem:[%s707 + $0x20] sm:$0xff] %vm708, %v668
            %714 = vst.msk [vmem:[%s707 + $0x28] sm:$0xff] %vm708, %v670
            %715 = vst.msk [vmem:[%s707 + $0x30] sm:$0xff] %vm708, %v672
            %716 = vst.msk [vmem:[%s707 + $0x38] sm:$0xff] %vm708, %v674
            %717 = vst.msk [vmem:[%s707 + $0x40] sm:$0xff] %vm708, %v676
            %718 = vst.msk [vmem:[%s707 + $0x48] sm:$0xff] %vm708, %v678
            %719 = vst.msk [vmem:[%s707 + $0x50] sm:$0xff] %vm708, %v680
            %720 = vst.msk [vmem:[%s707 + $0x58] sm:$0xff] %vm708, %v682
            %721 = vst.msk [vmem:[%s707 + $0x60] sm:$0xff] %vm708, %v684
            %722 = vst.msk [vmem:[%s707 + $0x68] sm:$0xff] %vm708, %v686
            %723 = vst.msk [vmem:[%s707 + $0x70] sm:$0xff] %vm708, %v688
            %724 = vst.msk [vmem:[%s707 + $0x78] sm:$0xff] %vm708, %v690
          $region69: #{tpu_custom_call.1} parent=64 // pred_fallthru
            _
          %s725 = scalar_lea.vmem [#allocation4], %s297
          %v726 = vld [vmem:[%s725] sm:$0xff]
          %v727 = vld [vmem:[%s725 + $0x8] sm:$0xff]
          %v728 = vld [vmem:[%s725 + $0x10] sm:$0xff]
          %v729 = vld [vmem:[%s725 + $0x18] sm:$0xff]
          %v730 = vld [vmem:[%s725 + $0x20] sm:$0xff]
          %v731 = vld [vmem:[%s725 + $0x28] sm:$0xff]
          %v732 = vld [vmem:[%s725 + $0x30] sm:$0xff]
          %v733 = vld [vmem:[%s725 + $0x38] sm:$0xff]
          %v734 = vld [vmem:[%s725 + $0x40] sm:$0xff]
          %v735 = vld [vmem:[%s725 + $0x48] sm:$0xff]
          %v736 = vld [vmem:[%s725 + $0x50] sm:$0xff]
          %v737 = vld [vmem:[%s725 + $0x58] sm:$0xff]
          %v738 = vld [vmem:[%s725 + $0x60] sm:$0xff]
          %v739 = vld [vmem:[%s725 + $0x68] sm:$0xff]
          %v740 = vld [vmem:[%s725 + $0x70] sm:$0xff]
          %v741 = vld [vmem:[%s725 + $0x78] sm:$0xff]
          %v742 = vld [vmem:[#allocation3] sm:$0xff]
          %v743 = vld [vmem:[#allocation3 + $0x8] sm:$0xff]
          %v744 = vld [vmem:[#allocation3 + $0x10] sm:$0xff]
          %v745 = vld [vmem:[#allocation3 + $0x18] sm:$0xff]
          %v746 = vld [vmem:[#allocation3 + $0x20] sm:$0xff]
          %v747 = vld [vmem:[#allocation3 + $0x28] sm:$0xff]
          %v748 = vld [vmem:[#allocation3 + $0x30] sm:$0xff]
          %v749 = vld [vmem:[#allocation3 + $0x38] sm:$0xff]
          %v750 = vld [vmem:[#allocation3 + $0x40] sm:$0xff]
          %v751 = vld [vmem:[#allocation3 + $0x48] sm:$0xff]
          %v752 = vld [vmem:[#allocation3 + $0x50] sm:$0xff]
          %v753 = vld [vmem:[#allocation3 + $0x58] sm:$0xff]
          %v754 = vld [vmem:[#allocation3 + $0x60] sm:$0xff]
          %v755 = vld [vmem:[#allocation3 + $0x68] sm:$0xff]
          %v756 = vld [vmem:[#allocation3 + $0x70] sm:$0xff]
          %v757 = vld [vmem:[#allocation3 + $0x78] sm:$0xff]
          %759 = vset.pattern.permute.xlu0 0
          %760 = vperm.xlu0 %759, %v726
          %v761 = vpop.permute.xlu0 %760
          %764 = vset.pattern.permute.xlu0 0
          %765 = vperm.xlu0 %764, %v727
          %v766 = vpop.permute.xlu0 %765
          %769 = vset.pattern.permute.xlu0 0
          %770 = vperm.xlu0 %769, %v728
          %v771 = vpop.permute.xlu0 %770
          %774 = vset.pattern.permute.xlu0 0
          %775 = vperm.xlu0 %774, %v729
          %v776 = vpop.permute.xlu0 %775
          %779 = vset.pattern.permute.xlu0 0
          %780 = vperm.xlu0 %779, %v730
          %v781 = vpop.permute.xlu0 %780
          %784 = vset.pattern.permute.xlu0 0
          %785 = vperm.xlu0 %784, %v731
          %v786 = vpop.permute.xlu0 %785
          %789 = vset.pattern.permute.xlu0 0
          %790 = vperm.xlu0 %789, %v732
          %v791 = vpop.permute.xlu0 %790
          %794 = vset.pattern.permute.xlu0 0
          %795 = vperm.xlu0 %794, %v733
          %v796 = vpop.permute.xlu0 %795
          %799 = vset.pattern.permute.xlu0 0
          %800 = vperm.xlu0 %799, %v734
          %v801 = vpop.permute.xlu0 %800
          %804 = vset.pattern.permute.xlu0 0
          %805 = vperm.xlu0 %804, %v735
          %v806 = vpop.permute.xlu0 %805
          %809 = vset.pattern.permute.xlu0 0
          %810 = vperm.xlu0 %809, %v736
          %v811 = vpop.permute.xlu0 %810
          %814 = vset.pattern.permute.xlu0 0
          %815 = vperm.xlu0 %814, %v737
          %v816 = vpop.permute.xlu0 %815
          %819 = vset.pattern.permute.xlu0 0
          %820 = vperm.xlu0 %819, %v738
          %v821 = vpop.permute.xlu0 %820
          %824 = vset.pattern.permute.xlu0 0
          %825 = vperm.xlu0 %824, %v739
          %v826 = vpop.permute.xlu0 %825
          %829 = vset.pattern.permute.xlu0 0
          %830 = vperm.xlu0 %829, %v740
          %v831 = vpop.permute.xlu0 %830
          %834 = vset.pattern.permute.xlu0 0
          %835 = vperm.xlu0 %834, %v741
          %v836 = vpop.permute.xlu0 %835
          %v838 = vmul.f32 %v742, %v761
          %v839 = vmul.f32 %v743, %v766
          %v840 = vmul.f32 %v744, %v771
          %v841 = vmul.f32 %v745, %v776
          %v842 = vmul.f32 %v746, %v781
          %v843 = vmul.f32 %v747, %v786
          %v844 = vmul.f32 %v748, %v791
          %v845 = vmul.f32 %v749, %v796
          %v846 = vmul.f32 %v750, %v801
          %v847 = vmul.f32 %v751, %v806
          %v848 = vmul.f32 %v752, %v811
          %v849 = vmul.f32 %v753, %v816
          %v850 = vmul.f32 %v754, %v821
          %v851 = vmul.f32 %v755, %v826
          %v852 = vmul.f32 %v756, %v831
          %v853 = vmul.f32 %v757, %v836
          %v854 = vpack.c.bf16 %v839, %v838
          %v855 = vpack.c.bf16 %v841, %v840
          %v856 = vpack.c.bf16 %v843, %v842
          %v857 = vpack.c.bf16 %v845, %v844
          %v858 = vpack.c.bf16 %v847, %v846
          %v859 = vpack.c.bf16 %v849, %v848
          %v860 = vpack.c.bf16 %v851, %v850
          %v861 = vpack.c.bf16 %v853, %v852
          %s862 = sshra.s32 %s297, 3
          %s863 = sand.u32 %s297, 7
          %s864 = smul.addr %s862, 4
          %s865 = scalar_lea.vmem %s375, %s864 [#allocation2]
          %v866 = vld [vmem:[%s865] sm:$0xf]
          %v867 = vld [vmem:[%s865 + $0x4] sm:$0xf]
          %v868 = vld [vmem:[%s865 + $0x8] sm:$0xf]
          %v869 = vld [vmem:[%s865 + $0xc] sm:$0xf]
          %v870 = vld [vmem:[%s865 + $0x10] sm:$0xf]
          %v871 = vld [vmem:[%s865 + $0x14] sm:$0xf]
          %v872 = vld [vmem:[%s865 + $0x18] sm:$0xf]
          %v873 = vld [vmem:[%s865 + $0x1c] sm:$0xf]
          %v874 = vld [vmem:[%s865 + $0x20] sm:$0xf]
          %v875 = vld [vmem:[%s865 + $0x24] sm:$0xf]
          %v876 = vld [vmem:[%s865 + $0x28] sm:$0xf]
          %v877 = vld [vmem:[%s865 + $0x2c] sm:$0xf]
          %v878 = vld [vmem:[%s865 + $0x30] sm:$0xf]
          %v879 = vld [vmem:[%s865 + $0x34] sm:$0xf]
          %v880 = vld [vmem:[%s865 + $0x38] sm:$0xf]
          %v881 = vld [vmem:[%s865 + $0x3c] sm:$0xf]
          %v882 = vld [vmem:[%s255] sm:$0xf]
          %v883 = vld [vmem:[%s255 + $0x4] sm:$0xf]
          %v884 = vld [vmem:[%s255 + $0x8] sm:$0xf]
          %v885 = vld [vmem:[%s255 + $0xc] sm:$0xf]
          %v886 = vld [vmem:[%s255 + $0x10] sm:$0xf]
          %v887 = vld [vmem:[%s255 + $0x14] sm:$0xf]
          %v888 = vld [vmem:[%s255 + $0x18] sm:$0xf]
          %v889 = vld [vmem:[%s255 + $0x1c] sm:$0xf]
          %v890 = vld [vmem:[%s255 + $0x20] sm:$0xf]
          %v891 = vld [vmem:[%s255 + $0x24] sm:$0xf]
          %v892 = vld [vmem:[%s255 + $0x28] sm:$0xf]
          %v893 = vld [vmem:[%s255 + $0x2c] sm:$0xf]
          %v894 = vld [vmem:[%s255 + $0x30] sm:$0xf]
          %v895 = vld [vmem:[%s255 + $0x34] sm:$0xf]
          %v896 = vld [vmem:[%s255 + $0x38] sm:$0xf]
          %v897 = vld [vmem:[%s255 + $0x3c] sm:$0xf]
          %v898 = vld [vmem:[%s264] sm:$0xf]
          %v899 = vld [vmem:[%s264 + $0x4] sm:$0xf]
          %v900 = vld [vmem:[%s264 + $0x8] sm:$0xf]
          %v901 = vld [vmem:[%s264 + $0xc] sm:$0xf]
          %v902 = vld [vmem:[%s264 + $0x10] sm:$0xf]
          %v903 = vld [vmem:[%s264 + $0x14] sm:$0xf]
          %v904 = vld [vmem:[%s264 + $0x18] sm:$0xf]
          %v905 = vld [vmem:[%s264 + $0x1c] sm:$0xf]
          %v906 = vld [vmem:[%s264 + $0x20] sm:$0xf]
          %v907 = vld [vmem:[%s264 + $0x24] sm:$0xf]
          %v908 = vld [vmem:[%s264 + $0x28] sm:$0xf]
          %v909 = vld [vmem:[%s264 + $0x2c] sm:$0xf]
          %v910 = vld [vmem:[%s264 + $0x30] sm:$0xf]
          %v911 = vld [vmem:[%s264 + $0x34] sm:$0xf]
          %v912 = vld [vmem:[%s264 + $0x38] sm:$0xf]
          %v913 = vld [vmem:[%s264 + $0x3c] sm:$0xf]
          %v930 = vunpack.c.l.b16 %v866
          %v931 = vunpack.c.l.b16 %v867
          %v932 = vunpack.c.l.b16 %v868
          %v933 = vunpack.c.l.b16 %v869
          %v934 = vunpack.c.l.b16 %v870
          %v935 = vunpack.c.l.b16 %v871
          %v936 = vunpack.c.l.b16 %v872
          %v937 = vunpack.c.l.b16 %v873
          %v938 = vunpack.c.l.b16 %v874
          %v939 = vunpack.c.l.b16 %v875
          %v940 = vunpack.c.l.b16 %v876
          %v941 = vunpack.c.l.b16 %v877
          %v942 = vunpack.c.l.b16 %v878
          %v943 = vunpack.c.l.b16 %v879
          %v944 = vunpack.c.l.b16 %v880
          %v945 = vunpack.c.l.b16 %v881
          %v946 = vpack.c.b16 %v931, %v930
          %v947 = vpack.c.b16 %v933, %v932
          %v948 = vpack.c.b16 %v935, %v934
          %v949 = vpack.c.b16 %v937, %v936
          %v950 = vpack.c.b16 %v939, %v938
          %v951 = vpack.c.b16 %v941, %v940
          %v952 = vpack.c.b16 %v943, %v942
          %v953 = vpack.c.b16 %v945, %v944
          %v978 = vunpack.c.l.b16 %v898
          %v979 = vunpack.c.l.b16 %v899
          %v980 = vunpack.c.l.b16 %v900
          %v981 = vunpack.c.l.b16 %v901
          %v982 = vunpack.c.l.b16 %v902
          %v983 = vunpack.c.l.b16 %v903
          %v984 = vunpack.c.l.b16 %v904
          %v985 = vunpack.c.l.b16 %v905
          %v986 = vunpack.c.l.b16 %v906
          %v987 = vunpack.c.l.b16 %v907
          %v988 = vunpack.c.l.b16 %v908
          %v989 = vunpack.c.l.b16 %v909
          %v990 = vunpack.c.l.b16 %v910
          %v991 = vunpack.c.l.b16 %v911
          %v992 = vunpack.c.l.b16 %v912
          %v993 = vunpack.c.l.b16 %v913
          %v994 = vpack.c.b16 %v979, %v978
          %v995 = vpack.c.b16 %v981, %v980
          %v996 = vpack.c.b16 %v983, %v982
          %v997 = vpack.c.b16 %v985, %v984
          %v998 = vpack.c.b16 %v987, %v986
          %v999 = vpack.c.b16 %v989, %v988
          %v1000 = vpack.c.b16 %v991, %v990
          %v1001 = vpack.c.b16 %v993, %v992
          %1010 = vmatprep.subr.bf16.mxu0 0
          %1011 = vmatpush1.bf16.msra.mxu0 %v1001
          %1012 = vmatprep.subr.bf16.mxu0 0
          %1013 = vmatpush1.bf16.msra.mxu0 %v1000
          %1014 = vmatprep.subr.bf16.mxu0 0
          %1015 = vmatpush1.bf16.msra.mxu0 %v999
          %1016 = vmatprep.subr.bf16.mxu0 0
          %1017 = vmatpush1.bf16.msra.mxu0 %v998
          %1018 = vmatprep.subr.bf16.mxu0 0
          %1019 = vmatpush1.bf16.msra.mxu0 %v997
          %1020 = vmatprep.subr.bf16.mxu0 0
          %1021 = vmatpush1.bf16.msra.mxu0 %v996
          %1022 = vmatprep.subr.bf16.mxu0 0
          %1023 = vmatpush1.bf16.msra.mxu0 %v995
          %1024 = vmatprep.subr.bf16.mxu0 0
          %1025 = vmatpush1.bf16.msra.mxu0 %v994
          %1026 = vmatprep.subr.bf16.mxu0 0
          %1027 = vmatpush2.bf16.msra.mxu0 0
          %1028 = vmatprep.subr.bf16.mxu0 0
          %1029 = vmatpush2.bf16.msra.mxu0 0
          %1030 = vmatprep.subr.bf16.mxu0 0
          %1031 = vmatpush2.bf16.msra.mxu0 0
          %1032 = vmatprep.subr.bf16.mxu0 0
          %1033 = vmatpush2.bf16.msra.mxu0 0
          %1034 = vmatprep.subr.bf16.mxu0 0
          %1035 = vmatpush2.bf16.msra.mxu0 0
          %1036 = vmatprep.subr.bf16.mxu0 0
          %1037 = vmatpush2.bf16.msra.mxu0 0
          %1038 = vmatprep.subr.bf16.mxu0 0
          %1039 = vmatpush2.bf16.msra.mxu0 0
          %1040 = vmatprep.subr.bf16.mxu0 0
          %1041 = vmatpush2.bf16.msra.mxu0 0
          %1042 = vmatprep.mubr.bf16.mxu0 0
          %1043 = vmatmul.mubr.bf16.gmra.mxu0 %v946
          %v1044 = vpop.f32.mrf.mxu0
          %v1045 = vadd.f32 0.0, %v1044
          %v1046 = vpop.f32.mrf.mxu0
          %v1047 = vpop.f32.mrf.mxu0
          %v1048 = vadd.f32 0.0, %v1047
          %v1049 = vpop.f32.mrf.mxu0
          %1050 = vmatprep.mubr.bf16.mxu0 0
          %1051 = vmatmul.mubr.bf16.gmra.mxu0 %v947
          %v1052 = vpop.f32.mrf.mxu0
          %v1053 = vadd.f32 0.0, %v1052
          %v1054 = vpop.f32.mrf.mxu0
          %v1055 = vpop.f32.mrf.mxu0
          %v1056 = vadd.f32 0.0, %v1055
          %v1057 = vpop.f32.mrf.mxu0
          %1058 = vmatprep.mubr.bf16.mxu0 0
          %1059 = vmatmul.mubr.bf16.gmra.mxu0 %v948
          %v1060 = vpop.f32.mrf.mxu0
          %v1061 = vadd.f32 0.0, %v1060
          %v1062 = vpop.f32.mrf.mxu0
          %v1063 = vpop.f32.mrf.mxu0
          %v1064 = vadd.f32 0.0, %v1063
          %v1065 = vpop.f32.mrf.mxu0
          %1066 = vmatprep.mubr.bf16.mxu0 0
          %1067 = vmatmul.mubr.bf16.gmra.mxu0 %v949
          %v1068 = vpop.f32.mrf.mxu0
          %v1069 = vadd.f32 0.0, %v1068
          %v1070 = vpop.f32.mrf.mxu0
          %v1071 = vpop.f32.mrf.mxu0
          %v1072 = vadd.f32 0.0, %v1071
          %v1073 = vpop.f32.mrf.mxu0
          %1074 = vmatprep.mubr.bf16.mxu0 0
          %1075 = vmatmul.mubr.bf16.gmra.mxu0 %v950
          %v1076 = vpop.f32.mrf.mxu0
          %v1077 = vadd.f32 0.0, %v1076
          %v1078 = vpop.f32.mrf.mxu0
          %v1079 = vpop.f32.mrf.mxu0
          %v1080 = vadd.f32 0.0, %v1079
          %v1081 = vpop.f32.mrf.mxu0
          %1082 = vmatprep.mubr.bf16.mxu0 0
          %1083 = vmatmul.mubr.bf16.gmra.mxu0 %v951
          %v1084 = vpop.f32.mrf.mxu0
          %v1085 = vadd.f32 0.0, %v1084
          %v1086 = vpop.f32.mrf.mxu0
          %v1087 = vpop.f32.mrf.mxu0
          %v1088 = vadd.f32 0.0, %v1087
          %v1089 = vpop.f32.mrf.mxu0
          %1090 = vmatprep.mubr.bf16.mxu0 0
          %1091 = vmatmul.mubr.bf16.gmra.mxu0 %v952
          %v1092 = vpop.f32.mrf.mxu0
          %v1093 = vadd.f32 0.0, %v1092
          %v1094 = vpop.f32.mrf.mxu0
          %v1095 = vpop.f32.mrf.mxu0
          %v1096 = vadd.f32 0.0, %v1095
          %v1097 = vpop.f32.mrf.mxu0
          %1098 = vmatprep.mubr.bf16.mxu0 0
          %1099 = vmatmul.mubr.bf16.gmra.mxu0 %v953
          %v1100 = vpop.f32.mrf.mxu0
          %v1101 = vadd.f32 0.0, %v1100
          %v1102 = vpop.f32.mrf.mxu0
          %v1103 = vpop.f32.mrf.mxu0
          %v1104 = vadd.f32 0.0, %v1103
          %v1105 = vpop.f32.mrf.mxu0
          %1106 = vdwg.mxu0
          %v1123 = vunpack.c.l.b16 %v882
          %v1124 = vunpack.c.l.b16 %v883
          %v1125 = vunpack.c.l.b16 %v884
          %v1126 = vunpack.c.l.b16 %v885
          %v1127 = vunpack.c.l.b16 %v886
          %v1128 = vunpack.c.l.b16 %v887
          %v1129 = vunpack.c.l.b16 %v888
          %v1130 = vunpack.c.l.b16 %v889
          %v1131 = vunpack.c.l.b16 %v890
          %v1132 = vunpack.c.l.b16 %v891
          %v1133 = vunpack.c.l.b16 %v892
          %v1134 = vunpack.c.l.b16 %v893
          %v1135 = vunpack.c.l.b16 %v894
          %v1136 = vunpack.c.l.b16 %v895
          %v1137 = vunpack.c.l.b16 %v896
          %v1138 = vunpack.c.l.b16 %v897
          %v1139 = vpack.c.b16 %v1124, %v1123
          %v1140 = vpack.c.b16 %v1126, %v1125
          %v1141 = vpack.c.b16 %v1128, %v1127
          %v1142 = vpack.c.b16 %v1130, %v1129
          %v1143 = vpack.c.b16 %v1132, %v1131
          %v1144 = vpack.c.b16 %v1134, %v1133
          %v1145 = vpack.c.b16 %v1136, %v1135
          %v1146 = vpack.c.b16 %v1138, %v1137
          %1155 = vmatprep.subr.bf16.mxu0 0
          %1156 = vmatpush1.bf16.msra.mxu0 %v1146
          %1157 = vmatprep.subr.bf16.mxu0 0
          %1158 = vmatpush1.bf16.msra.mxu0 %v1145
          %1159 = vmatprep.subr.bf16.mxu0 0
          %1160 = vmatpush1.bf16.msra.mxu0 %v1144
          %1161 = vmatprep.subr.bf16.mxu0 0
          %1162 = vmatpush1.bf16.msra.mxu0 %v1143
          %1163 = vmatprep.subr.bf16.mxu0 0
          %1164 = vmatpush1.bf16.msra.mxu0 %v1142
          %1165 = vmatprep.subr.bf16.mxu0 0
          %1166 = vmatpush1.bf16.msra.mxu0 %v1141
          %1167 = vmatprep.subr.bf16.mxu0 0
          %1168 = vmatpush1.bf16.msra.mxu0 %v1140
          %1169 = vmatprep.subr.bf16.mxu0 0
          %1170 = vmatpush1.bf16.msra.mxu0 %v1139
          %1171 = vmatprep.subr.bf16.mxu0 0
          %1172 = vmatpush2.bf16.msra.mxu0 0
          %1173 = vmatprep.subr.bf16.mxu0 0
          %1174 = vmatpush2.bf16.msra.mxu0 0
          %1175 = vmatprep.subr.bf16.mxu0 0
          %1176 = vmatpush2.bf16.msra.mxu0 0
          %1177 = vmatprep.subr.bf16.mxu0 0
          %1178 = vmatpush2.bf16.msra.mxu0 0
          %1179 = vmatprep.subr.bf16.mxu0 0
          %1180 = vmatpush2.bf16.msra.mxu0 0
          %1181 = vmatprep.subr.bf16.mxu0 0
          %1182 = vmatpush2.bf16.msra.mxu0 0
          %1183 = vmatprep.subr.bf16.mxu0 0
          %1184 = vmatpush2.bf16.msra.mxu0 0
          %1185 = vmatprep.subr.bf16.mxu0 0
          %1186 = vmatpush2.bf16.msra.mxu0 0
          %1187 = vmatprep.mubr.bf16.mxu0 0
          %1188 = vmatmul.mubr.bf16.gmra.mxu0 %v854
          %v1189 = vpop.f32.mrf.mxu0
          %v1190 = vadd.f32 %v1045, %v1189
          %v1191 = vpop.f32.mrf.mxu0
          %v1192 = vpop.f32.mrf.mxu0
          %v1193 = vadd.f32 %v1048, %v1192
          %v1194 = vpop.f32.mrf.mxu0
          %1195 = vmatprep.mubr.bf16.mxu0 0
          %1196 = vmatmul.mubr.bf16.gmra.mxu0 %v855
          %v1197 = vpop.f32.mrf.mxu0
          %v1198 = vadd.f32 %v1053, %v1197
          %v1199 = vpop.f32.mrf.mxu0
          %v1200 = vpop.f32.mrf.mxu0
          %v1201 = vadd.f32 %v1056, %v1200
          %v1202 = vpop.f32.mrf.mxu0
          %1203 = vmatprep.mubr.bf16.mxu0 0
          %1204 = vmatmul.mubr.bf16.gmra.mxu0 %v856
          %v1205 = vpop.f32.mrf.mxu0
          %v1206 = vadd.f32 %v1061, %v1205
          %v1207 = vpop.f32.mrf.mxu0
          %v1208 = vpop.f32.mrf.mxu0
          %v1209 = vadd.f32 %v1064, %v1208
          %v1210 = vpop.f32.mrf.mxu0
          %1211 = vmatprep.mubr.bf16.mxu0 0
          %1212 = vmatmul.mubr.bf16.gmra.mxu0 %v857
          %v1213 = vpop.f32.mrf.mxu0
          %v1214 = vadd.f32 %v1069, %v1213
          %v1215 = vpop.f32.mrf.mxu0
          %v1216 = vpop.f32.mrf.mxu0
          %v1217 = vadd.f32 %v1072, %v1216
          %v1218 = vpop.f32.mrf.mxu0
          %1219 = vmatprep.mubr.bf16.mxu0 0
          %1220 = vmatmul.mubr.bf16.gmra.mxu0 %v858
          %v1221 = vpop.f32.mrf.mxu0
          %v1222 = vadd.f32 %v1077, %v1221
          %v1223 = vpop.f32.mrf.mxu0
          %v1224 = vpop.f32.mrf.mxu0
          %v1225 = vadd.f32 %v1080, %v1224
          %v1226 = vpop.f32.mrf.mxu0
          %1227 = vmatprep.mubr.bf16.mxu0 0
          %1228 = vmatmul.mubr.bf16.gmra.mxu0 %v859
          %v1229 = vpop.f32.mrf.mxu0
          %v1230 = vadd.f32 %v1085, %v1229
          %v1231 = vpop.f32.mrf.mxu0
          %v1232 = vpop.f32.mrf.mxu0
          %v1233 = vadd.f32 %v1088, %v1232
          %v1234 = vpop.f32.mrf.mxu0
          %1235 = vmatprep.mubr.bf16.mxu0 0
          %1236 = vmatmul.mubr.bf16.gmra.mxu0 %v860
          %v1237 = vpop.f32.mrf.mxu0
          %v1238 = vadd.f32 %v1093, %v1237
          %v1239 = vpop.f32.mrf.mxu0
          %v1240 = vpop.f32.mrf.mxu0
          %v1241 = vadd.f32 %v1096, %v1240
          %v1242 = vpop.f32.mrf.mxu0
          %1243 = vmatprep.mubr.bf16.mxu0 0
          %1244 = vmatmul.mubr.bf16.gmra.mxu0 %v861
          %v1245 = vpop.f32.mrf.mxu0
          %v1246 = vadd.f32 %v1101, %v1245
          %v1247 = vpop.f32.mrf.mxu0
          %v1248 = vpop.f32.mrf.mxu0
          %v1249 = vadd.f32 %v1104, %v1248
          %v1250 = vpop.f32.mrf.mxu0
          %1251 = vdwg.mxu0
          %v1252 = vld [vmem:[%s294] sm:$0x1]
          %v1254 = vlaneseq
          %v1255 = vshrl.u32 %v1254, 7
          %v1256 = vsub.s32 0, %v1255
          %v1257 = vrot.slane %v1252, %v1256
          %v1259 = vadd.f32 %v1190, %v1257
          %v1260 = vadd.f32 %v1193, %v1257
          %v1261 = vadd.f32 %v1198, %v1257
          %v1262 = vadd.f32 %v1201, %v1257
          %v1263 = vadd.f32 %v1206, %v1257
          %v1264 = vadd.f32 %v1209, %v1257
          %v1265 = vadd.f32 %v1214, %v1257
          %v1266 = vadd.f32 %v1217, %v1257
          %v1267 = vadd.f32 %v1222, %v1257
          %v1268 = vadd.f32 %v1225, %v1257
          %v1269 = vadd.f32 %v1230, %v1257
          %v1270 = vadd.f32 %v1233, %v1257
          %v1271 = vadd.f32 %v1238, %v1257
          %v1272 = vadd.f32 %v1241, %v1257
          %v1273 = vadd.f32 %v1246, %v1257
          %v1274 = vadd.f32 %v1249, %v1257
          %s1275 = ssub.s32 1, %s353
          %v1276 = vmax.f32 %v1259, 0.0
          %v1277 = vmax.f32 %v1260, 0.0
          %v1278 = vmax.f32 %v1261, 0.0
          %v1279 = vmax.f32 %v1262, 0.0
          %v1280 = vmax.f32 %v1263, 0.0
          %v1281 = vmax.f32 %v1264, 0.0
          %v1282 = vmax.f32 %v1265, 0.0
          %v1283 = vmax.f32 %v1266, 0.0
          %v1284 = vmax.f32 %v1267, 0.0
          %v1285 = vmax.f32 %v1268, 0.0
          %v1286 = vmax.f32 %v1269, 0.0
          %v1287 = vmax.f32 %v1270, 0.0
          %v1288 = vmax.f32 %v1271, 0.0
          %v1289 = vmax.f32 %v1272, 0.0
          %v1290 = vmax.f32 %v1273, 0.0
          %v1291 = vmax.f32 %v1274, 0.0
          %v1292 = vpack.c.bf16 %v1277, %v1276
          %v1293 = vpack.c.bf16 %v1279, %v1278
          %v1294 = vpack.c.bf16 %v1281, %v1280
          %v1295 = vpack.c.bf16 %v1283, %v1282
          %v1296 = vpack.c.bf16 %v1285, %v1284
          %v1297 = vpack.c.bf16 %v1287, %v1286
          %v1298 = vpack.c.bf16 %v1289, %v1288
          %v1299 = vpack.c.bf16 %v1291, %v1290
          %s1300 = smul.u32 %s1275, 16
          %s1301 = smul.addr %s1300, 4
          %s1302 = scalar_lea.vmem [#allocation2], %s1301
          %v1311 = vunpack.c.l.b16 %v1292
          %v1312 = vunpack.c.h.b16 %v1292
          %v1313 = vunpack.c.l.b16 %v1293
          %v1314 = vunpack.c.h.b16 %v1293
          %v1315 = vunpack.c.l.b16 %v1294
          %v1316 = vunpack.c.h.b16 %v1294
          %v1317 = vunpack.c.l.b16 %v1295
          %v1318 = vunpack.c.h.b16 %v1295
          %v1319 = vunpack.c.l.b16 %v1296
          %v1320 = vunpack.c.h.b16 %v1296
          %v1321 = vunpack.c.l.b16 %v1297
          %v1322 = vunpack.c.h.b16 %v1297
          %v1323 = vunpack.c.l.b16 %v1298
          %v1324 = vunpack.c.h.b16 %v1298
          %v1325 = vunpack.c.l.b16 %v1299
          %v1326 = vunpack.c.h.b16 %v1299
          %v1327 = vpack.c.b16 %v1311, %v1311
          %v1328 = vpack.c.b16 %v1312, %v1312
          %v1329 = vpack.c.b16 %v1313, %v1313
          %v1330 = vpack.c.b16 %v1314, %v1314
          %v1331 = vpack.c.b16 %v1315, %v1315
          %v1332 = vpack.c.b16 %v1316, %v1316
          %v1333 = vpack.c.b16 %v1317, %v1317
          %v1334 = vpack.c.b16 %v1318, %v1318
          %v1335 = vpack.c.b16 %v1319, %v1319
          %v1336 = vpack.c.b16 %v1320, %v1320
          %v1337 = vpack.c.b16 %v1321, %v1321
          %v1338 = vpack.c.b16 %v1322, %v1322
          %v1339 = vpack.c.b16 %v1323, %v1323
          %v1340 = vpack.c.b16 %v1324, %v1324
          %v1341 = vpack.c.b16 %v1325, %v1325
          %v1342 = vpack.c.b16 %v1326, %v1326
          %s1359 = smul.addr %s862, 4
          %s1360 = scalar_lea.vmem %s1302, %s1359 [#allocation2]
          %1361 = vst [vmem:[%s1360] sm:$0xf] %v1327
          %1362 = vst [vmem:[%s1360 + $0x4] sm:$0xf] %v1328
          %1363 = vst [vmem:[%s1360 + $0x8] sm:$0xf] %v1329
          %1364 = vst [vmem:[%s1360 + $0xc] sm:$0xf] %v1330
          %1365 = vst [vmem:[%s1360 + $0x10] sm:$0xf] %v1331
          %1366 = vst [vmem:[%s1360 + $0x14] sm:$0xf] %v1332
          %1367 = vst [vmem:[%s1360 + $0x18] sm:$0xf] %v1333
          %1368 = vst [vmem:[%s1360 + $0x1c] sm:$0xf] %v1334
          %1369 = vst [vmem:[%s1360 + $0x20] sm:$0xf] %v1335
          %1370 = vst [vmem:[%s1360 + $0x24] sm:$0xf] %v1336
          %1371 = vst [vmem:[%s1360 + $0x28] sm:$0xf] %v1337
          %1372 = vst [vmem:[%s1360 + $0x2c] sm:$0xf] %v1338
          %1373 = vst [vmem:[%s1360 + $0x30] sm:$0xf] %v1339
          %1374 = vst [vmem:[%s1360 + $0x34] sm:$0xf] %v1340
          %1375 = vst [vmem:[%s1360 + $0x38] sm:$0xf] %v1341
          %1376 = vst [vmem:[%s1360 + $0x3c] sm:$0xf] %v1342
          %p1377 = scmp.eq.s32.totalorder %s26, 2
          // Predicated region
          $region70: #{tpu_custom_call.1} parent=64 // pred_check
            %p1378 = pneg %p1377
          $region71: #{tpu_custom_call.1} parent=64 // pred_check_branch
            %1380 = sbr.rel (%p1378) target = $region73
          $region72: #{tpu_custom_call.1} parent=64 // pred_region
            %1381 = vst [vmem:[#allocation11] sm:$0xff] %v1259
            %1382 = vst [vmem:[#allocation11 + $0x8] sm:$0xff] %v1260
            %1383 = vst [vmem:[#allocation11 + $0x10] sm:$0xff] %v1261
            %1384 = vst [vmem:[#allocation11 + $0x18] sm:$0xff] %v1262
            %1385 = vst [vmem:[#allocation11 + $0x20] sm:$0xff] %v1263
            %1386 = vst [vmem:[#allocation11 + $0x28] sm:$0xff] %v1264
            %1387 = vst [vmem:[#allocation11 + $0x30] sm:$0xff] %v1265
            %1388 = vst [vmem:[#allocation11 + $0x38] sm:$0xff] %v1266
            %1389 = vst [vmem:[#allocation11 + $0x40] sm:$0xff] %v1267
            %1390 = vst [vmem:[#allocation11 + $0x48] sm:$0xff] %v1268
            %1391 = vst [vmem:[#allocation11 + $0x50] sm:$0xff] %v1269
            %1392 = vst [vmem:[#allocation11 + $0x58] sm:$0xff] %v1270
            %1393 = vst [vmem:[#allocation11 + $0x60] sm:$0xff] %v1271
            %1394 = vst [vmem:[#allocation11 + $0x68] sm:$0xff] %v1272
            %1395 = vst [vmem:[#allocation11 + $0x70] sm:$0xff] %v1273
            %1396 = vst [vmem:[#allocation11 + $0x78] sm:$0xff] %v1274
          $region73: #{tpu_custom_call.1} parent=64 // pred_fallthru
            _
        $region65: #{tpu_custom_call.1} parent=35 // pred_fallthru
          _
        // Predicated region
        $region74: #{tpu_custom_call.1} parent=35 // pred_check
          %p1397 = pneg %p157
        $region75: #{tpu_custom_call.1} parent=35 // pred_check_branch
          %1399 = sbr.rel (%p1397) target = $region77
        $region76: #{tpu_custom_call.1} parent=35 // pred_region
          %s1400 = smul.u32 16, %s27
          %s1402 = ssub.s32 2048, 2048
          %1403 = vsyncadd [#allocation7], %s1402
          %s1404 = smul.addr %s1400, 128
          %s1405 = scalar_lea.hbm %s5, %s1404
          %s1406 = sshll.u32 [#allocation11], 4
          %s1407 = int_to_ptr.vmem [resolvable:$true] %s1406
          %1412 = dma.vmem_to_hbm [thread:$0]  %s1407, 2048, %s1405, [#allocation7], 128, 128, 8
        $region77: #{tpu_custom_call.1} parent=35 // pred_fallthru
          _
        // Predicated region
        $region78: #{tpu_custom_call.1} parent=35 // pred_check
          %p1413 = pneg %p157
        $region79: #{tpu_custom_call.1} parent=35 // pred_check_branch
          %1415 = sbr.rel (%p1413) target = $region81
        $region80: #{tpu_custom_call.1} parent=35 // pred_region
          %1416 = dma.done [#allocation7], 2048
        $region81: #{tpu_custom_call.1} parent=35 // pred_fallthru
          _
      $region36: #{tpu_custom_call.1} parent=5 // pred_fallthru
        _
      %p1417 = scmp.le.s32.totalorder 2, %s16
      // Predicated region
      $region82: #{tpu_custom_call.1} parent=5 // pred_check
        %p1418 = pneg %p1417
      $region83: #{tpu_custom_call.1} parent=5 // pred_check_branch
        %1420 = sbr.rel (%p1418) target = $region85
      $region84: #{tpu_custom_call.1} parent=5 // pred_region
        %s1421 = ssub.s32 %s16, 2
      $region85: #{tpu_custom_call.1} parent=5 // pred_fallthru
        _
    $region6: #{tpu_custom_call.1} parent=1 // loop_footer
      %s20 = sadd.s32 1, %s16
    $region7: #{tpu_custom_call.1} parent=1 // loop_footer_branch
      %15 = sbr.rel target = $region3
    $region8: #{tpu_custom_call.1} parent=1 // loop_exit
      _
    %1422 = vsyncpa [#allocation6], 1
    %s1423 = scalar_lea.sflag [#allocation6], 1
    %1424 = vsyncpa %s1423, 1
    %1425 = vsyncpa [#allocation9], 1
    %s1426 = scalar_lea.sflag [#allocation9], 1
    %1427 = vsyncpa %s1426, 1
    %1428 = vsyncpa [#allocation7], 1
    %s1429 = scalar_lea.sflag [#allocation7], 1
    %1430 = vsyncpa %s1429, 1

</llo_original>
